<compile_context>
chip_gen: v5e
topology: v5e:2x2
jax: 0.10.0
libtpu: 0.0.40
codegen_flags: <defaults>
</compile_context>

<pallas_src>
import functools

import jax
import jax.numpy as jnp
from jax.experimental import pallas as pl
from jax.experimental.pallas import tpu as pltpu


def conv1x1_kernel(x_ref, w_ref, o_ref):
    # x_ref: (1, Cin, HW) f32   -- one image, native NCHW layout (flattened HW)
    # w_ref: (Cout, Cin) bf16
    # o_ref: (1, Cout, HW) out_dtype
    x = x_ref[0].astype(jnp.bfloat16)                     # in-kernel cast (free-ish)
    y = jnp.dot(w_ref[...], x, preferred_element_type=jnp.float32)  # (Cout, HW)
    o_ref[0] = y.astype(o_ref.dtype)


def prepare_weight(weight_oihw, dtype=jnp.bfloat16):
    """One-time weight prep: OIHW (Cout, Cin, 1, 1) -> (Cout, Cin), cast to bf16.

    With the (Cout, HW) output layout this is a plain reshape (no transpose).
    Do it once; it is a constant parameter.
    """
    Cout, Cin = weight_oihw.shape[0], weight_oihw.shape[1]
    return weight_oihw.reshape(Cout, Cin).astype(dtype)


@functools.partial(jax.jit, static_argnames=("out_dtype",))
def conv2d_1x1(x_nchw, w_oc, *, out_dtype=jnp.float32):
    """Module-equivalent forward: NCHW in, NCHW out. No transposes anywhere.

    x_nchw: [N, Cin, H, W] float32
    w_oc:   prepared (Cout, Cin) weight (see prepare_weight)
    """
    N, Cin, H, W = x_nchw.shape
    Cout, Cin2 = w_oc.shape
    assert Cin == Cin2
    HW = H * W

    x_nkm = x_nchw.reshape(N, Cin, HW)  # contiguous reshape: no data movement

    cost = pl.CostEstimate(
        flops=2 * N * HW * Cin * Cout,
        transcendentals=0,
        bytes_accessed=(
            N * Cin * HW * x_nchw.dtype.itemsize
            + Cout * Cin * w_oc.dtype.itemsize
            + N * Cout * HW * jnp.dtype(out_dtype).itemsize
        ),
    )

    y = pl.pallas_call(
        conv1x1_kernel,
        out_shape=jax.ShapeDtypeStruct((N, Cout, HW), out_dtype),
        grid=(N,),  # N=1 for this module -> single step; batch-parallel otherwise
        in_specs=[
            pl.BlockSpec((1, Cin, HW), lambda n: (n, 0, 0)),   # one image
            pl.BlockSpec((Cout, Cin), lambda n: (0, 0)),       # whole weight, resident
        ],
        out_specs=pl.BlockSpec((1, Cout, HW), lambda n: (n, 0, 0)),
        compiler_params=pltpu.CompilerParams(
            dimension_semantics=("parallel",),
        ),
        cost_estimate=cost,
    )(x_nkm, w_oc)

    return y.reshape(N, Cout, H, W)  # contiguous reshape: no data movement


if __name__ == "__main__":
    key = jax.random.PRNGKey(0)
    kx, kw = jax.random.split(key)

    # Shapes implied by the module's forward pass.
    x190 = jax.random.normal(kx, (1, 192, 7, 7), dtype=jnp.float32)
    # Conv2d(192, 1152, 1, bias=False) -> OIHW [1152, 192, 1, 1]
    weight = jax.random.normal(kw, (1152, 192, 1, 1), dtype=jnp.float32) * 0.05

    # One-time weight prep (reshape + bf16 cast), hoisted out of the hot path.
    w_oc = jax.block_until_ready(prepare_weight(weight, dtype=jnp.bfloat16))

    # f32-output path (module-parity dtype).
    y = jax.block_until_ready(conv2d_1x1(x190, w_oc))

    # Reference: same bf16-quantized operands, f32 accumulation (matches kernel math).
    ref = jnp.einsum(
        "nchw,oc->nohw",
        x190.astype(jnp.bfloat16).astype(jnp.float32),
        w_oc.astype(jnp.float32),
    )
    assert y.shape == (1, 1152, 7, 7), y.shape
    assert jnp.allclose(y, ref, atol=2e-3, rtol=2e-3), float(jnp.max(jnp.abs(y - ref)))

    # bf16-output path (per perf review: halves writeback; use if the consumer
    # accepts bf16).
    y_bf16 = jax.block_until_ready(conv2d_1x1(x190, w_oc, out_dtype=jnp.bfloat16))
    assert y_bf16.dtype == jnp.bfloat16
    assert jnp.allclose(y_bf16.astype(jnp.float32), ref, atol=1e-2, rtol=1e-2), float(
        jnp.max(jnp.abs(y_bf16.astype(jnp.float32) - ref))
    )

    print("KERNEL_OK")
</pallas_src>

<mosaic_0001>
module attributes {stable_mosaic.version = 11 : i64} {
  func.func @conv1x1_kernel(%arg0: i32, %arg1: memref<1x192x49xf32, #tpu.memory_space<vmem>>, %arg2: memref<1152x192xbf16, #tpu.memory_space<vmem>>, %arg3: memref<1x1152x49xf32, #tpu.memory_space<vmem>>) attributes {dimension_semantics = [#tpu.dimension_semantics<parallel>], iteration_bounds = array<i64: 1>, scalar_prefetch = 0 : i64, scratch_operands = 0 : i64, tpu.core_type = #tpu.core_type<tc>, window_params = [{transform_indices = @transform_0, window_bounds = array<i64: 1, 192, 49>}, {pipeline_mode = #tpu.pipeline_mode<synchronous>, transform_indices = @transform_1, window_bounds = array<i64: 1152, 192>}, {transform_indices = @transform_2, window_bounds = array<i64: 1, 1152, 49>}]} {
    %c0 = arith.constant 0 : index
    %c0_0 = arith.constant 0 : index
    %c0_1 = arith.constant 0 : index
    %0 = vector.load %arg1[%c0, %c0_0, %c0_1] : memref<1x192x49xf32, #tpu.memory_space<vmem>>, vector<1x192x49xf32>
    %1 = vector.shape_cast %0 : vector<1x192x49xf32> to vector<192x49xf32>
    %2 = arith.truncf %1 : vector<192x49xf32> to vector<192x49xbf16>
    %c0_2 = arith.constant 0 : index
    %c0_3 = arith.constant 0 : index
    %3 = vector.load %arg2[%c0_2, %c0_3] : memref<1152x192xbf16, #tpu.memory_space<vmem>>, vector<1152x192xbf16>
    %cst = arith.constant dense<0.000000e+00> : vector<1152x49xf32>
    %4 = tpu.matmul %3, %2, %cst {dimension_numbers = #tpu.dot_dimension_numbers<[1], [0], [0], [1], [0, 0, 1, 1], [], []>} : vector<1152x192xbf16>, vector<192x49xbf16>, vector<1152x49xf32> -> vector<1152x49xf32>
    %c0_4 = arith.constant 0 : index
    %c0_5 = arith.constant 0 : index
    %c0_6 = arith.constant 0 : index
    %5 = vector.load %arg3[%c0_4, %c0_5, %c0_6] : memref<1x1152x49xf32, #tpu.memory_space<vmem>>, vector<1x1152x49xf32>
    %6 = vector.shape_cast %5 : vector<1x1152x49xf32> to vector<1152x49xf32>
    %7 = vector.shape_cast %4 : vector<1152x49xf32> to vector<1x1152x49xf32>
    tpu.vector_store %arg3[%c0_4, %c0_5, %c0_6], %7 {strides = array<i32>} : memref<1x1152x49xf32, #tpu.memory_space<vmem>>, vector<1x1152x49xf32>,
    return
  }
  func.func @transform_0(%arg0: i32) -> (i32, i32, i32) {
    %c0_i32 = arith.constant 0 : i32
    %c0_i32_0 = arith.constant 0 : i32
    %c0_i32_1 = arith.constant 0 : i32
    return %arg0, %c0_i32, %c0_i32_0 : i32, i32, i32
  }
  func.func @transform_1(%arg0: i32) -> (i32, i32) {
    %c0_i32 = arith.constant 0 : i32
    %c0_i32_0 = arith.constant 0 : i32
    %c0_i32_1 = arith.constant 0 : i32
    return %c0_i32, %c0_i32_0 : i32, i32
  }
  func.func @transform_2(%arg0: i32) -> (i32, i32, i32) {
    %c0_i32 = arith.constant 0 : i32
    %c0_i32_0 = arith.constant 0 : i32
    %c0_i32_1 = arith.constant 0 : i32
    return %arg0, %c0_i32, %c0_i32_0 : i32, i32, i32
  }
}

</mosaic_0001>

<llo_original>
// kernel: conv2d_1x1.1
$region0: #{conv2d_1x1.1}
  #allocation0 [shape = 'u32[]', space=smem, size = 0x4, offset = 0x4, fixed_abs, tag = 'smem constant byte address 0x4 - core index']
  #allocation1 [shape = 'u32[72,128]{1,0:T(1,128)}', space=vmem, size = 0x9000, scoped, tag = 'internal scratch']
  %s0 = inlined_call_operand.vmem [shape: f32[1,192,49], index: 0, kind: input, shape index: {}]
  %s1 = inlined_call_operand.vmem [shape: bf16[1152,192], index: 1, kind: input, shape index: {}]
  %s2 = inlined_call_operand.vmem [shape: f32[1,1152,49], index: 2, kind: output, shape index: {}]
  %s3 = sld [smem:[#allocation0]]
  $region18: #{conv2d_1x1.1} parent=0
    _
  %s5 = ssub.s32 1, %s3
  %s6 = scalar_select 0, %s5, %s3
  // Predicated region
  $region2: #{conv2d_1x1.1} parent=0 // pred_check
    _
  $region3: #{conv2d_1x1.1} parent=0 // pred_check_branch
    %8 = sbr.rel (0) target = $region5
  $region4: #{conv2d_1x1.1} parent=0 // pred_region
    _
  $region5: #{conv2d_1x1.1} parent=0 // pred_fallthru
    _
  // Predicated region
  $region6: #{conv2d_1x1.1} parent=0 // pred_check
    _
  $region7: #{conv2d_1x1.1} parent=0 // pred_check_branch
    %10 = sbr.rel (0) target = $region9
  $region8: #{conv2d_1x1.1} parent=0 // pred_region
    _
  $region9: #{conv2d_1x1.1} parent=0 // pred_fallthru
    _
  %v12 = vld [vmem:[%s0] sm:$0xff]
  %v13 = vld [vmem:[%s0 + $0x8] sm:$0xff]
  %v14 = vld [vmem:[%s0 + $0x10] sm:$0xff]
  %v15 = vld [vmem:[%s0 + $0x18] sm:$0xff]
  %v16 = vld [vmem:[%s0 + $0x20] sm:$0xff]
  %v17 = vld [vmem:[%s0 + $0x28] sm:$0xff]
  %v18 = vld [vmem:[%s0 + $0x30] sm:$0xff]
  %v19 = vld [vmem:[%s0 + $0x38] sm:$0xff]
  %v20 = vld [vmem:[%s0 + $0x40] sm:$0xff]
  %v21 = vld [vmem:[%s0 + $0x48] sm:$0xff]
  %v22 = vld [vmem:[%s0 + $0x50] sm:$0xff]
  %v23 = vld [vmem:[%s0 + $0x58] sm:$0xff]
  %v24 = vld [vmem:[%s0 + $0x60] sm:$0xff]
  %v25 = vld [vmem:[%s0 + $0x68] sm:$0xff]
  %v26 = vld [vmem:[%s0 + $0x70] sm:$0xff]
  %v27 = vld [vmem:[%s0 + $0x78] sm:$0xff]
  %v28 = vld [vmem:[%s0 + $0x80] sm:$0xff]
  %v29 = vld [vmem:[%s0 + $0x88] sm:$0xff]
  %v30 = vld [vmem:[%s0 + $0x90] sm:$0xff]
  %v31 = vld [vmem:[%s0 + $0x98] sm:$0xff]
  %v32 = vld [vmem:[%s0 + $0xa0] sm:$0xff]
  %v33 = vld [vmem:[%s0 + $0xa8] sm:$0xff]
  %v34 = vld [vmem:[%s0 + $0xb0] sm:$0xff]
  %v35 = vld [vmem:[%s0 + $0xb8] sm:$0xff]
  %v36 = vpack.c.bf16 %v13, %v12
  %v37 = vpack.c.bf16 %v15, %v14
  %v38 = vpack.c.bf16 %v17, %v16
  %v39 = vpack.c.bf16 %v19, %v18
  %v40 = vpack.c.bf16 %v21, %v20
  %v41 = vpack.c.bf16 %v23, %v22
  %v42 = vpack.c.bf16 %v25, %v24
  %v43 = vpack.c.bf16 %v27, %v26
  %v44 = vpack.c.bf16 %v29, %v28
  %v45 = vpack.c.bf16 %v31, %v30
  %v46 = vpack.c.bf16 %v33, %v32
  %v47 = vpack.c.bf16 %v35, %v34
  %v48 = vld [vmem:[%s1] sm:$0xff]
  %v49 = vld [vmem:[%s1 + $0x8] sm:$0xff]
  %v50 = vld [vmem:[%s1 + $0x10] sm:$0xff]
  %v51 = vld [vmem:[%s1 + $0x18] sm:$0xff]
  %v52 = vld [vmem:[%s1 + $0x20] sm:$0xff]
  %v53 = vld [vmem:[%s1 + $0x28] sm:$0xff]
  %v54 = vld [vmem:[%s1 + $0x30] sm:$0xff]
  %v55 = vld [vmem:[%s1 + $0x38] sm:$0xff]
  %v56 = vld [vmem:[%s1 + $0x40] sm:$0xff]
  %v57 = vld [vmem:[%s1 + $0x48] sm:$0xff]
  %v58 = vld [vmem:[%s1 + $0x50] sm:$0xff]
  %v59 = vld [vmem:[%s1 + $0x58] sm:$0xff]
  %v60 = vld [vmem:[%s1 + $0x60] sm:$0xff]
  %v61 = vld [vmem:[%s1 + $0x68] sm:$0xff]
  %v62 = vld [vmem:[%s1 + $0x70] sm:$0xff]
  %v63 = vld [vmem:[%s1 + $0x78] sm:$0xff]
  %v64 = vld [vmem:[%s1 + $0x80] sm:$0xff]
  %v65 = vld [vmem:[%s1 + $0x88] sm:$0xff]
  %v66 = vld [vmem:[%s1 + $0x90] sm:$0xff]
  %v67 = vld [vmem:[%s1 + $0x98] sm:$0xff]
  %v68 = vld [vmem:[%s1 + $0xa0] sm:$0xff]
  %v69 = vld [vmem:[%s1 + $0xa8] sm:$0xff]
  %v70 = vld [vmem:[%s1 + $0xb0] sm:$0xff]
  %v71 = vld [vmem:[%s1 + $0xb8] sm:$0xff]
  %v72 = vld [vmem:[%s1 + $0xc0] sm:$0xff]
  %v73 = vld [vmem:[%s1 + $0xc8] sm:$0xff]
  %v74 = vld [vmem:[%s1 + $0xd0] sm:$0xff]
  %v75 = vld [vmem:[%s1 + $0xd8] sm:$0xff]
  %v76 = vld [vmem:[%s1 + $0xe0] sm:$0xff]
  %v77 = vld [vmem:[%s1 + $0xe8] sm:$0xff]
  %v78 = vld [vmem:[%s1 + $0xf0] sm:$0xff]
  %v79 = vld [vmem:[%s1 + $0xf8] sm:$0xff]
  %v80 = vld [vmem:[%s1 + $0x100] sm:$0xff]
  %v81 = vld [vmem:[%s1 + $0x108] sm:$0xff]
  %v82 = vld [vmem:[%s1 + $0x110] sm:$0xff]
  %v83 = vld [vmem:[%s1 + $0x118] sm:$0xff]
  %v84 = vld [vmem:[%s1 + $0x120] sm:$0xff]
  %v85 = vld [vmem:[%s1 + $0x128] sm:$0xff]
  %v86 = vld [vmem:[%s1 + $0x130] sm:$0xff]
  %v87 = vld [vmem:[%s1 + $0x138] sm:$0xff]
  %v88 = vld [vmem:[%s1 + $0x140] sm:$0xff]
  %v89 = vld [vmem:[%s1 + $0x148] sm:$0xff]
  %v90 = vld [vmem:[%s1 + $0x150] sm:$0xff]
  %v91 = vld [vmem:[%s1 + $0x158] sm:$0xff]
  %v92 = vld [vmem:[%s1 + $0x160] sm:$0xff]
  %v93 = vld [vmem:[%s1 + $0x168] sm:$0xff]
  %v94 = vld [vmem:[%s1 + $0x170] sm:$0xff]
  %v95 = vld [vmem:[%s1 + $0x178] sm:$0xff]
  %v96 = vld [vmem:[%s1 + $0x180] sm:$0xff]
  %v97 = vld [vmem:[%s1 + $0x188] sm:$0xff]
  %v98 = vld [vmem:[%s1 + $0x190] sm:$0xff]
  %v99 = vld [vmem:[%s1 + $0x198] sm:$0xff]
  %v100 = vld [vmem:[%s1 + $0x1a0] sm:$0xff]
  %v101 = vld [vmem:[%s1 + $0x1a8] sm:$0xff]
  %v102 = vld [vmem:[%s1 + $0x1b0] sm:$0xff]
  %v103 = vld [vmem:[%s1 + $0x1b8] sm:$0xff]
  %v104 = vld [vmem:[%s1 + $0x1c0] sm:$0xff]
  %v105 = vld [vmem:[%s1 + $0x1c8] sm:$0xff]
  %v106 = vld [vmem:[%s1 + $0x1d0] sm:$0xff]
  %v107 = vld [vmem:[%s1 + $0x1d8] sm:$0xff]
  %v108 = vld [vmem:[%s1 + $0x1e0] sm:$0xff]
  %v109 = vld [vmem:[%s1 + $0x1e8] sm:$0xff]
  %v110 = vld [vmem:[%s1 + $0x1f0] sm:$0xff]
  %v111 = vld [vmem:[%s1 + $0x1f8] sm:$0xff]
  %v112 = vld [vmem:[%s1 + $0x200] sm:$0xff]
  %v113 = vld [vmem:[%s1 + $0x208] sm:$0xff]
  %v114 = vld [vmem:[%s1 + $0x210] sm:$0xff]
  %v115 = vld [vmem:[%s1 + $0x218] sm:$0xff]
  %v116 = vld [vmem:[%s1 + $0x220] sm:$0xff]
  %v117 = vld [vmem:[%s1 + $0x228] sm:$0xff]
  %v118 = vld [vmem:[%s1 + $0x230] sm:$0xff]
  %v119 = vld [vmem:[%s1 + $0x238] sm:$0xff]
  %v120 = vld [vmem:[%s1 + $0x240] sm:$0xff]
  %v121 = vld [vmem:[%s1 + $0x248] sm:$0xff]
  %v122 = vld [vmem:[%s1 + $0x250] sm:$0xff]
  %v123 = vld [vmem:[%s1 + $0x258] sm:$0xff]
  %v124 = vld [vmem:[%s1 + $0x260] sm:$0xff]
  %v125 = vld [vmem:[%s1 + $0x268] sm:$0xff]
  %v126 = vld [vmem:[%s1 + $0x270] sm:$0xff]
  %v127 = vld [vmem:[%s1 + $0x278] sm:$0xff]
  %v128 = vld [vmem:[%s1 + $0x280] sm:$0xff]
  %v129 = vld [vmem:[%s1 + $0x288] sm:$0xff]
  %v130 = vld [vmem:[%s1 + $0x290] sm:$0xff]
  %v131 = vld [vmem:[%s1 + $0x298] sm:$0xff]
  %v132 = vld [vmem:[%s1 + $0x2a0] sm:$0xff]
  %v133 = vld [vmem:[%s1 + $0x2a8] sm:$0xff]
  %v134 = vld [vmem:[%s1 + $0x2b0] sm:$0xff]
  %v135 = vld [vmem:[%s1 + $0x2b8] sm:$0xff]
  %v136 = vld [vmem:[%s1 + $0x2c0] sm:$0xff]
  %v137 = vld [vmem:[%s1 + $0x2c8] sm:$0xff]
  %v138 = vld [vmem:[%s1 + $0x2d0] sm:$0xff]
  %v139 = vld [vmem:[%s1 + $0x2d8] sm:$0xff]
  %v140 = vld [vmem:[%s1 + $0x2e0] sm:$0xff]
  %v141 = vld [vmem:[%s1 + $0x2e8] sm:$0xff]
  %v142 = vld [vmem:[%s1 + $0x2f0] sm:$0xff]
  %v143 = vld [vmem:[%s1 + $0x2f8] sm:$0xff]
  %v144 = vld [vmem:[%s1 + $0x300] sm:$0xff]
  %v145 = vld [vmem:[%s1 + $0x308] sm:$0xff]
  %v146 = vld [vmem:[%s1 + $0x310] sm:$0xff]
  %v147 = vld [vmem:[%s1 + $0x318] sm:$0xff]
  %v148 = vld [vmem:[%s1 + $0x320] sm:$0xff]
  %v149 = vld [vmem:[%s1 + $0x328] sm:$0xff]
  %v150 = vld [vmem:[%s1 + $0x330] sm:$0xff]
  %v151 = vld [vmem:[%s1 + $0x338] sm:$0xff]
  %v152 = vld [vmem:[%s1 + $0x340] sm:$0xff]
  %v153 = vld [vmem:[%s1 + $0x348] sm:$0xff]
  %v154 = vld [vmem:[%s1 + $0x350] sm:$0xff]
  %v155 = vld [vmem:[%s1 + $0x358] sm:$0xff]
  %v156 = vld [vmem:[%s1 + $0x360] sm:$0xff]
  %v157 = vld [vmem:[%s1 + $0x368] sm:$0xff]
  %v158 = vld [vmem:[%s1 + $0x370] sm:$0xff]
  %v159 = vld [vmem:[%s1 + $0x378] sm:$0xff]
  %v160 = vld [vmem:[%s1 + $0x380] sm:$0xff]
  %v161 = vld [vmem:[%s1 + $0x388] sm:$0xff]
  %v162 = vld [vmem:[%s1 + $0x390] sm:$0xff]
  %v163 = vld [vmem:[%s1 + $0x398] sm:$0xff]
  %v164 = vld [vmem:[%s1 + $0x3a0] sm:$0xff]
  %v165 = vld [vmem:[%s1 + $0x3a8] sm:$0xff]
  %v166 = vld [vmem:[%s1 + $0x3b0] sm:$0xff]
  %v167 = vld [vmem:[%s1 + $0x3b8] sm:$0xff]
  %v168 = vld [vmem:[%s1 + $0x3c0] sm:$0xff]
  %v169 = vld [vmem:[%s1 + $0x3c8] sm:$0xff]
  %v170 = vld [vmem:[%s1 + $0x3d0] sm:$0xff]
  %v171 = vld [vmem:[%s1 + $0x3d8] sm:$0xff]
  %v172 = vld [vmem:[%s1 + $0x3e0] sm:$0xff]
  %v173 = vld [vmem:[%s1 + $0x3e8] sm:$0xff]
  %v174 = vld [vmem:[%s1 + $0x3f0] sm:$0xff]
  %v175 = vld [vmem:[%s1 + $0x3f8] sm:$0xff]
  %v176 = vld [vmem:[%s1 + $0x400] sm:$0xff]
  %v177 = vld [vmem:[%s1 + $0x408] sm:$0xff]
  %v178 = vld [vmem:[%s1 + $0x410] sm:$0xff]
  %v179 = vld [vmem:[%s1 + $0x418] sm:$0xff]
  %v180 = vld [vmem:[%s1 + $0x420] sm:$0xff]
  %v181 = vld [vmem:[%s1 + $0x428] sm:$0xff]
  %v182 = vld [vmem:[%s1 + $0x430] sm:$0xff]
  %v183 = vld [vmem:[%s1 + $0x438] sm:$0xff]
  %v184 = vld [vmem:[%s1 + $0x440] sm:$0xff]
  %v185 = vld [vmem:[%s1 + $0x448] sm:$0xff]
  %v186 = vld [vmem:[%s1 + $0x450] sm:$0xff]
  %v187 = vld [vmem:[%s1 + $0x458] sm:$0xff]
  %v188 = vld [vmem:[%s1 + $0x460] sm:$0xff]
  %v189 = vld [vmem:[%s1 + $0x468] sm:$0xff]
  %v190 = vld [vmem:[%s1 + $0x470] sm:$0xff]
  %v191 = vld [vmem:[%s1 + $0x478] sm:$0xff]
  %v336 = vunpack.c.l.b16 %v48
  %v337 = vunpack.c.h.b16 %v48
  %v338 = vunpack.c.l.b16 %v49
  %v339 = vunpack.c.h.b16 %v49
  %v340 = vunpack.c.l.b16 %v50
  %v341 = vunpack.c.h.b16 %v50
  %v342 = vunpack.c.l.b16 %v51
  %v343 = vunpack.c.h.b16 %v51
  %v344 = vunpack.c.l.b16 %v52
  %v345 = vunpack.c.h.b16 %v52
  %v346 = vunpack.c.l.b16 %v53
  %v347 = vunpack.c.h.b16 %v53
  %v348 = vunpack.c.l.b16 %v54
  %v349 = vunpack.c.h.b16 %v54
  %v350 = vunpack.c.l.b16 %v55
  %v351 = vunpack.c.h.b16 %v55
  %v352 = vunpack.c.l.b16 %v56
  %v353 = vunpack.c.h.b16 %v56
  %v354 = vunpack.c.l.b16 %v57
  %v355 = vunpack.c.h.b16 %v57
  %v356 = vunpack.c.l.b16 %v58
  %v357 = vunpack.c.h.b16 %v58
  %v358 = vunpack.c.l.b16 %v59
  %v359 = vunpack.c.h.b16 %v59
  %v360 = vunpack.c.l.b16 %v60
  %v361 = vunpack.c.h.b16 %v60
  %v362 = vunpack.c.l.b16 %v61
  %v363 = vunpack.c.h.b16 %v61
  %v364 = vunpack.c.l.b16 %v62
  %v365 = vunpack.c.h.b16 %v62
  %v366 = vunpack.c.l.b16 %v63
  %v367 = vunpack.c.h.b16 %v63
  %v368 = vunpack.c.l.b16 %v64
  %v369 = vunpack.c.h.b16 %v64
  %v370 = vunpack.c.l.b16 %v65
  %v371 = vunpack.c.h.b16 %v65
  %v372 = vunpack.c.l.b16 %v66
  %v373 = vunpack.c.h.b16 %v66
  %v374 = vunpack.c.l.b16 %v67
  %v375 = vunpack.c.h.b16 %v67
  %v376 = vunpack.c.l.b16 %v68
  %v377 = vunpack.c.h.b16 %v68
  %v378 = vunpack.c.l.b16 %v69
  %v379 = vunpack.c.h.b16 %v69
  %v380 = vunpack.c.l.b16 %v70
  %v381 = vunpack.c.h.b16 %v70
  %v382 = vunpack.c.l.b16 %v71
  %v383 = vunpack.c.h.b16 %v71
  %v384 = vunpack.c.l.b16 %v72
  %v385 = vunpack.c.h.b16 %v72
  %v386 = vunpack.c.l.b16 %v73
  %v387 = vunpack.c.h.b16 %v73
  %v388 = vunpack.c.l.b16 %v74
  %v389 = vunpack.c.h.b16 %v74
  %v390 = vunpack.c.l.b16 %v75
  %v391 = vunpack.c.h.b16 %v75
  %v392 = vunpack.c.l.b16 %v76
  %v393 = vunpack.c.h.b16 %v76
  %v394 = vunpack.c.l.b16 %v77
  %v395 = vunpack.c.h.b16 %v77
  %v396 = vunpack.c.l.b16 %v78
  %v397 = vunpack.c.h.b16 %v78
  %v398 = vunpack.c.l.b16 %v79
  %v399 = vunpack.c.h.b16 %v79
  %v400 = vunpack.c.l.b16 %v80
  %v401 = vunpack.c.h.b16 %v80
  %v402 = vunpack.c.l.b16 %v81
  %v403 = vunpack.c.h.b16 %v81
  %v404 = vunpack.c.l.b16 %v82
  %v405 = vunpack.c.h.b16 %v82
  %v406 = vunpack.c.l.b16 %v83
  %v407 = vunpack.c.h.b16 %v83
  %v408 = vunpack.c.l.b16 %v84
  %v409 = vunpack.c.h.b16 %v84
  %v410 = vunpack.c.l.b16 %v85
  %v411 = vunpack.c.h.b16 %v85
  %v412 = vunpack.c.l.b16 %v86
  %v413 = vunpack.c.h.b16 %v86
  %v414 = vunpack.c.l.b16 %v87
  %v415 = vunpack.c.h.b16 %v87
  %v416 = vunpack.c.l.b16 %v88
  %v417 = vunpack.c.h.b16 %v88
  %v418 = vunpack.c.l.b16 %v89
  %v419 = vunpack.c.h.b16 %v89
  %v420 = vunpack.c.l.b16 %v90
  %v421 = vunpack.c.h.b16 %v90
  %v422 = vunpack.c.l.b16 %v91
  %v423 = vunpack.c.h.b16 %v91
  %v424 = vunpack.c.l.b16 %v92
  %v425 = vunpack.c.h.b16 %v92
  %v426 = vunpack.c.l.b16 %v93
  %v427 = vunpack.c.h.b16 %v93
  %v428 = vunpack.c.l.b16 %v94
  %v429 = vunpack.c.h.b16 %v94
  %v430 = vunpack.c.l.b16 %v95
  %v431 = vunpack.c.h.b16 %v95
  %v432 = vunpack.c.l.b16 %v96
  %v433 = vunpack.c.h.b16 %v96
  %v434 = vunpack.c.l.b16 %v97
  %v435 = vunpack.c.h.b16 %v97
  %v436 = vunpack.c.l.b16 %v98
  %v437 = vunpack.c.h.b16 %v98
  %v438 = vunpack.c.l.b16 %v99
  %v439 = vunpack.c.h.b16 %v99
  %v440 = vunpack.c.l.b16 %v100
  %v441 = vunpack.c.h.b16 %v100
  %v442 = vunpack.c.l.b16 %v101
  %v443 = vunpack.c.h.b16 %v101
  %v444 = vunpack.c.l.b16 %v102
  %v445 = vunpack.c.h.b16 %v102
  %v446 = vunpack.c.l.b16 %v103
  %v447 = vunpack.c.h.b16 %v103
  %v448 = vunpack.c.l.b16 %v104
  %v449 = vunpack.c.h.b16 %v104
  %v450 = vunpack.c.l.b16 %v105
  %v451 = vunpack.c.h.b16 %v105
  %v452 = vunpack.c.l.b16 %v106
  %v453 = vunpack.c.h.b16 %v106
  %v454 = vunpack.c.l.b16 %v107
  %v455 = vunpack.c.h.b16 %v107
  %v456 = vunpack.c.l.b16 %v108
  %v457 = vunpack.c.h.b16 %v108
  %v458 = vunpack.c.l.b16 %v109
  %v459 = vunpack.c.h.b16 %v109
  %v460 = vunpack.c.l.b16 %v110
  %v461 = vunpack.c.h.b16 %v110
  %v462 = vunpack.c.l.b16 %v111
  %v463 = vunpack.c.h.b16 %v111
  %v464 = vunpack.c.l.b16 %v112
  %v465 = vunpack.c.h.b16 %v112
  %v466 = vunpack.c.l.b16 %v113
  %v467 = vunpack.c.h.b16 %v113
  %v468 = vunpack.c.l.b16 %v114
  %v469 = vunpack.c.h.b16 %v114
  %v470 = vunpack.c.l.b16 %v115
  %v471 = vunpack.c.h.b16 %v115
  %v472 = vunpack.c.l.b16 %v116
  %v473 = vunpack.c.h.b16 %v116
  %v474 = vunpack.c.l.b16 %v117
  %v475 = vunpack.c.h.b16 %v117
  %v476 = vunpack.c.l.b16 %v118
  %v477 = vunpack.c.h.b16 %v118
  %v478 = vunpack.c.l.b16 %v119
  %v479 = vunpack.c.h.b16 %v119
  %v480 = vunpack.c.l.b16 %v120
  %v481 = vunpack.c.h.b16 %v120
  %v482 = vunpack.c.l.b16 %v121
  %v483 = vunpack.c.h.b16 %v121
  %v484 = vunpack.c.l.b16 %v122
  %v485 = vunpack.c.h.b16 %v122
  %v486 = vunpack.c.l.b16 %v123
  %v487 = vunpack.c.h.b16 %v123
  %v488 = vunpack.c.l.b16 %v124
  %v489 = vunpack.c.h.b16 %v124
  %v490 = vunpack.c.l.b16 %v125
  %v491 = vunpack.c.h.b16 %v125
  %v492 = vunpack.c.l.b16 %v126
  %v493 = vunpack.c.h.b16 %v126
  %v494 = vunpack.c.l.b16 %v127
  %v495 = vunpack.c.h.b16 %v127
  %v496 = vunpack.c.l.b16 %v128
  %v497 = vunpack.c.h.b16 %v128
  %v498 = vunpack.c.l.b16 %v129
  %v499 = vunpack.c.h.b16 %v129
  %v500 = vunpack.c.l.b16 %v130
  %v501 = vunpack.c.h.b16 %v130
  %v502 = vunpack.c.l.b16 %v131
  %v503 = vunpack.c.h.b16 %v131
  %v504 = vunpack.c.l.b16 %v132
  %v505 = vunpack.c.h.b16 %v132
  %v506 = vunpack.c.l.b16 %v133
  %v507 = vunpack.c.h.b16 %v133
  %v508 = vunpack.c.l.b16 %v134
  %v509 = vunpack.c.h.b16 %v134
  %v510 = vunpack.c.l.b16 %v135
  %v511 = vunpack.c.h.b16 %v135
  %v512 = vunpack.c.l.b16 %v136
  %v513 = vunpack.c.h.b16 %v136
  %v514 = vunpack.c.l.b16 %v137
  %v515 = vunpack.c.h.b16 %v137
  %v516 = vunpack.c.l.b16 %v138
  %v517 = vunpack.c.h.b16 %v138
  %v518 = vunpack.c.l.b16 %v139
  %v519 = vunpack.c.h.b16 %v139
  %v520 = vunpack.c.l.b16 %v140
  %v521 = vunpack.c.h.b16 %v140
  %v522 = vunpack.c.l.b16 %v141
  %v523 = vunpack.c.h.b16 %v141
  %v524 = vunpack.c.l.b16 %v142
  %v525 = vunpack.c.h.b16 %v142
  %v526 = vunpack.c.l.b16 %v143
  %v527 = vunpack.c.h.b16 %v143
  %v528 = vunpack.c.l.b16 %v144
  %v529 = vunpack.c.h.b16 %v144
  %v530 = vunpack.c.l.b16 %v145
  %v531 = vunpack.c.h.b16 %v145
  %v532 = vunpack.c.l.b16 %v146
  %v533 = vunpack.c.h.b16 %v146
  %v534 = vunpack.c.l.b16 %v147
  %v535 = vunpack.c.h.b16 %v147
  %v536 = vunpack.c.l.b16 %v148
  %v537 = vunpack.c.h.b16 %v148
  %v538 = vunpack.c.l.b16 %v149
  %v539 = vunpack.c.h.b16 %v149
  %v540 = vunpack.c.l.b16 %v150
  %v541 = vunpack.c.h.b16 %v150
  %v542 = vunpack.c.l.b16 %v151
  %v543 = vunpack.c.h.b16 %v151
  %v544 = vunpack.c.l.b16 %v152
  %v545 = vunpack.c.h.b16 %v152
  %v546 = vunpack.c.l.b16 %v153
  %v547 = vunpack.c.h.b16 %v153
  %v548 = vunpack.c.l.b16 %v154
  %v549 = vunpack.c.h.b16 %v154
  %v550 = vunpack.c.l.b16 %v155
  %v551 = vunpack.c.h.b16 %v155
  %v552 = vunpack.c.l.b16 %v156
  %v553 = vunpack.c.h.b16 %v156
  %v554 = vunpack.c.l.b16 %v157
  %v555 = vunpack.c.h.b16 %v157
  %v556 = vunpack.c.l.b16 %v158
  %v557 = vunpack.c.h.b16 %v158
  %v558 = vunpack.c.l.b16 %v159
  %v559 = vunpack.c.h.b16 %v159
  %v560 = vunpack.c.l.b16 %v160
  %v561 = vunpack.c.h.b16 %v160
  %v562 = vunpack.c.l.b16 %v161
  %v563 = vunpack.c.h.b16 %v161
  %v564 = vunpack.c.l.b16 %v162
  %v565 = vunpack.c.h.b16 %v162
  %v566 = vunpack.c.l.b16 %v163
  %v567 = vunpack.c.h.b16 %v163
  %v568 = vunpack.c.l.b16 %v164
  %v569 = vunpack.c.h.b16 %v164
  %v570 = vunpack.c.l.b16 %v165
  %v571 = vunpack.c.h.b16 %v165
  %v572 = vunpack.c.l.b16 %v166
  %v573 = vunpack.c.h.b16 %v166
  %v574 = vunpack.c.l.b16 %v167
  %v575 = vunpack.c.h.b16 %v167
  %v576 = vunpack.c.l.b16 %v168
  %v577 = vunpack.c.h.b16 %v168
  %v578 = vunpack.c.l.b16 %v169
  %v579 = vunpack.c.h.b16 %v169
  %v580 = vunpack.c.l.b16 %v170
  %v581 = vunpack.c.h.b16 %v170
  %v582 = vunpack.c.l.b16 %v171
  %v583 = vunpack.c.h.b16 %v171
  %v584 = vunpack.c.l.b16 %v172
  %v585 = vunpack.c.h.b16 %v172
  %v586 = vunpack.c.l.b16 %v173
  %v587 = vunpack.c.h.b16 %v173
  %v588 = vunpack.c.l.b16 %v174
  %v589 = vunpack.c.h.b16 %v174
  %v590 = vunpack.c.l.b16 %v175
  %v591 = vunpack.c.h.b16 %v175
  %v592 = vunpack.c.l.b16 %v176
  %v593 = vunpack.c.h.b16 %v176
  %v594 = vunpack.c.l.b16 %v177
  %v595 = vunpack.c.h.b16 %v177
  %v596 = vunpack.c.l.b16 %v178
  %v597 = vunpack.c.h.b16 %v178
  %v598 = vunpack.c.l.b16 %v179
  %v599 = vunpack.c.h.b16 %v179
  %v600 = vunpack.c.l.b16 %v180
  %v601 = vunpack.c.h.b16 %v180
  %v602 = vunpack.c.l.b16 %v181
  %v603 = vunpack.c.h.b16 %v181
  %v604 = vunpack.c.l.b16 %v182
  %v605 = vunpack.c.h.b16 %v182
  %v606 = vunpack.c.l.b16 %v183
  %v607 = vunpack.c.h.b16 %v183
  %v608 = vunpack.c.l.b16 %v184
  %v609 = vunpack.c.h.b16 %v184
  %v610 = vunpack.c.l.b16 %v185
  %v611 = vunpack.c.h.b16 %v185
  %v612 = vunpack.c.l.b16 %v186
  %v613 = vunpack.c.h.b16 %v186
  %v614 = vunpack.c.l.b16 %v187
  %v615 = vunpack.c.h.b16 %v187
  %v616 = vunpack.c.l.b16 %v188
  %v617 = vunpack.c.h.b16 %v188
  %v618 = vunpack.c.l.b16 %v189
  %v619 = vunpack.c.h.b16 %v189
  %v620 = vunpack.c.l.b16 %v190
  %v621 = vunpack.c.h.b16 %v190
  %v622 = vunpack.c.l.b16 %v191
  %v623 = vunpack.c.h.b16 %v191
  %v624 = vpack.c.b16 %v338, %v336
  %v625 = vpack.c.b16 %v339, %v337
  %v626 = vpack.c.b16 %v342, %v340
  %v627 = vpack.c.b16 %v343, %v341
  %v628 = vpack.c.b16 %v346, %v344
  %v629 = vpack.c.b16 %v347, %v345
  %v630 = vpack.c.b16 %v350, %v348
  %v631 = vpack.c.b16 %v351, %v349
  %v632 = vpack.c.b16 %v354, %v352
  %v633 = vpack.c.b16 %v355, %v353
  %v634 = vpack.c.b16 %v358, %v356
  %v635 = vpack.c.b16 %v359, %v357
  %v636 = vpack.c.b16 %v362, %v360
  %v637 = vpack.c.b16 %v363, %v361
  %v638 = vpack.c.b16 %v366, %v364
  %v639 = vpack.c.b16 %v367, %v365
  %v640 = vpack.c.b16 %v370, %v368
  %v641 = vpack.c.b16 %v371, %v369
  %v642 = vpack.c.b16 %v374, %v372
  %v643 = vpack.c.b16 %v375, %v373
  %v644 = vpack.c.b16 %v378, %v376
  %v645 = vpack.c.b16 %v379, %v377
  %v646 = vpack.c.b16 %v382, %v380
  %v647 = vpack.c.b16 %v383, %v381
  %v648 = vpack.c.b16 %v386, %v384
  %v649 = vpack.c.b16 %v387, %v385
  %v650 = vpack.c.b16 %v390, %v388
  %v651 = vpack.c.b16 %v391, %v389
  %v652 = vpack.c.b16 %v394, %v392
  %v653 = vpack.c.b16 %v395, %v393
  %v654 = vpack.c.b16 %v398, %v396
  %v655 = vpack.c.b16 %v399, %v397
  %v656 = vpack.c.b16 %v402, %v400
  %v657 = vpack.c.b16 %v403, %v401
  %v658 = vpack.c.b16 %v406, %v404
  %v659 = vpack.c.b16 %v407, %v405
  %v660 = vpack.c.b16 %v410, %v408
  %v661 = vpack.c.b16 %v411, %v409
  %v662 = vpack.c.b16 %v414, %v412
  %v663 = vpack.c.b16 %v415, %v413
  %v664 = vpack.c.b16 %v418, %v416
  %v665 = vpack.c.b16 %v419, %v417
  %v666 = vpack.c.b16 %v422, %v420
  %v667 = vpack.c.b16 %v423, %v421
  %v668 = vpack.c.b16 %v426, %v424
  %v669 = vpack.c.b16 %v427, %v425
  %v670 = vpack.c.b16 %v430, %v428
  %v671 = vpack.c.b16 %v431, %v429
  %v672 = vpack.c.b16 %v434, %v432
  %v673 = vpack.c.b16 %v435, %v433
  %v674 = vpack.c.b16 %v438, %v436
  %v675 = vpack.c.b16 %v439, %v437
  %v676 = vpack.c.b16 %v442, %v440
  %v677 = vpack.c.b16 %v443, %v441
  %v678 = vpack.c.b16 %v446, %v444
  %v679 = vpack.c.b16 %v447, %v445
  %v680 = vpack.c.b16 %v450, %v448
  %v681 = vpack.c.b16 %v451, %v449
  %v682 = vpack.c.b16 %v454, %v452
  %v683 = vpack.c.b16 %v455, %v453
  %v684 = vpack.c.b16 %v458, %v456
  %v685 = vpack.c.b16 %v459, %v457
  %v686 = vpack.c.b16 %v462, %v460
  %v687 = vpack.c.b16 %v463, %v461
  %v688 = vpack.c.b16 %v466, %v464
  %v689 = vpack.c.b16 %v467, %v465
  %v690 = vpack.c.b16 %v470, %v468
  %v691 = vpack.c.b16 %v471, %v469
  %v692 = vpack.c.b16 %v474, %v472
  %v693 = vpack.c.b16 %v475, %v473
  %v694 = vpack.c.b16 %v478, %v476
  %v695 = vpack.c.b16 %v479, %v477
  %v696 = vpack.c.b16 %v482, %v480
  %v697 = vpack.c.b16 %v483, %v481
  %v698 = vpack.c.b16 %v486, %v484
  %v699 = vpack.c.b16 %v487, %v485
  %v700 = vpack.c.b16 %v490, %v488
  %v701 = vpack.c.b16 %v491, %v489
  %v702 = vpack.c.b16 %v494, %v492
  %v703 = vpack.c.b16 %v495, %v493
  %v704 = vpack.c.b16 %v498, %v496
  %v705 = vpack.c.b16 %v499, %v497
  %v706 = vpack.c.b16 %v502, %v500
  %v707 = vpack.c.b16 %v503, %v501
  %v708 = vpack.c.b16 %v506, %v504
  %v709 = vpack.c.b16 %v507, %v505
  %v710 = vpack.c.b16 %v510, %v508
  %v711 = vpack.c.b16 %v511, %v509
  %v712 = vpack.c.b16 %v514, %v512
  %v713 = vpack.c.b16 %v515, %v513
  %v714 = vpack.c.b16 %v518, %v516
  %v715 = vpack.c.b16 %v519, %v517
  %v716 = vpack.c.b16 %v522, %v520
  %v717 = vpack.c.b16 %v523, %v521
  %v718 = vpack.c.b16 %v526, %v524
  %v719 = vpack.c.b16 %v527, %v525
  %v720 = vpack.c.b16 %v530, %v528
  %v721 = vpack.c.b16 %v531, %v529
  %v722 = vpack.c.b16 %v534, %v532
  %v723 = vpack.c.b16 %v535, %v533
  %v724 = vpack.c.b16 %v538, %v536
  %v725 = vpack.c.b16 %v539, %v537
  %v726 = vpack.c.b16 %v542, %v540
  %v727 = vpack.c.b16 %v543, %v541
  %v728 = vpack.c.b16 %v546, %v544
  %v729 = vpack.c.b16 %v547, %v545
  %v730 = vpack.c.b16 %v550, %v548
  %v731 = vpack.c.b16 %v551, %v549
  %v732 = vpack.c.b16 %v554, %v552
  %v733 = vpack.c.b16 %v555, %v553
  %v734 = vpack.c.b16 %v558, %v556
  %v735 = vpack.c.b16 %v559, %v557
  %v736 = vpack.c.b16 %v562, %v560
  %v737 = vpack.c.b16 %v563, %v561
  %v738 = vpack.c.b16 %v566, %v564
  %v739 = vpack.c.b16 %v567, %v565
  %v740 = vpack.c.b16 %v570, %v568
  %v741 = vpack.c.b16 %v571, %v569
  %v742 = vpack.c.b16 %v574, %v572
  %v743 = vpack.c.b16 %v575, %v573
  %v744 = vpack.c.b16 %v578, %v576
  %v745 = vpack.c.b16 %v579, %v577
  %v746 = vpack.c.b16 %v582, %v580
  %v747 = vpack.c.b16 %v583, %v581
  %v748 = vpack.c.b16 %v586, %v584
  %v749 = vpack.c.b16 %v587, %v585
  %v750 = vpack.c.b16 %v590, %v588
  %v751 = vpack.c.b16 %v591, %v589
  %v752 = vpack.c.b16 %v594, %v592
  %v753 = vpack.c.b16 %v595, %v593
  %v754 = vpack.c.b16 %v598, %v596
  %v755 = vpack.c.b16 %v599, %v597
  %v756 = vpack.c.b16 %v602, %v600
  %v757 = vpack.c.b16 %v603, %v601
  %v758 = vpack.c.b16 %v606, %v604
  %v759 = vpack.c.b16 %v607, %v605
  %v760 = vpack.c.b16 %v610, %v608
  %v761 = vpack.c.b16 %v611, %v609
  %v762 = vpack.c.b16 %v614, %v612
  %v763 = vpack.c.b16 %v615, %v613
  %v764 = vpack.c.b16 %v618, %v616
  %v765 = vpack.c.b16 %v619, %v617
  %v766 = vpack.c.b16 %v622, %v620
  %v767 = vpack.c.b16 %v623, %v621
  %vm840 = vcmask 523264
  %v842 = vsel %vm840, %v625, 0
  %v845 = vsel %vm840, %v627, 0
  %v848 = vsel %vm840, %v629, 0
  %v851 = vsel %vm840, %v631, 0
  %v854 = vsel %vm840, %v633, 0
  %v857 = vsel %vm840, %v635, 0
  %v860 = vsel %vm840, %v637, 0
  %v863 = vsel %vm840, %v639, 0
  %v866 = vsel %vm840, %v641, 0
  %v869 = vsel %vm840, %v643, 0
  %v872 = vsel %vm840, %v645, 0
  %v875 = vsel %vm840, %v647, 0
  %v878 = vsel %vm840, %v649, 0
  %v881 = vsel %vm840, %v651, 0
  %v884 = vsel %vm840, %v653, 0
  %v887 = vsel %vm840, %v655, 0
  %v890 = vsel %vm840, %v657, 0
  %v893 = vsel %vm840, %v659, 0
  %v896 = vsel %vm840, %v661, 0
  %v899 = vsel %vm840, %v663, 0
  %v902 = vsel %vm840, %v665, 0
  %v905 = vsel %vm840, %v667, 0
  %v908 = vsel %vm840, %v669, 0
  %v911 = vsel %vm840, %v671, 0
  %v914 = vsel %vm840, %v673, 0
  %v917 = vsel %vm840, %v675, 0
  %v920 = vsel %vm840, %v677, 0
  %v923 = vsel %vm840, %v679, 0
  %v926 = vsel %vm840, %v681, 0
  %v929 = vsel %vm840, %v683, 0
  %v932 = vsel %vm840, %v685, 0
  %v935 = vsel %vm840, %v687, 0
  %v938 = vsel %vm840, %v689, 0
  %v941 = vsel %vm840, %v691, 0
  %v944 = vsel %vm840, %v693, 0
  %v947 = vsel %vm840, %v695, 0
  %v950 = vsel %vm840, %v697, 0
  %v953 = vsel %vm840, %v699, 0
  %v956 = vsel %vm840, %v701, 0
  %v959 = vsel %vm840, %v703, 0
  %v962 = vsel %vm840, %v705, 0
  %v965 = vsel %vm840, %v707, 0
  %v968 = vsel %vm840, %v709, 0
  %v971 = vsel %vm840, %v711, 0
  %v974 = vsel %vm840, %v713, 0
  %v977 = vsel %vm840, %v715, 0
  %v980 = vsel %vm840, %v717, 0
  %v983 = vsel %vm840, %v719, 0
  %v986 = vsel %vm840, %v721, 0
  %v989 = vsel %vm840, %v723, 0
  %v992 = vsel %vm840, %v725, 0
  %v995 = vsel %vm840, %v727, 0
  %v998 = vsel %vm840, %v729, 0
  %v1001 = vsel %vm840, %v731, 0
  %v1004 = vsel %vm840, %v733, 0
  %v1007 = vsel %vm840, %v735, 0
  %v1010 = vsel %vm840, %v737, 0
  %v1013 = vsel %vm840, %v739, 0
  %v1016 = vsel %vm840, %v741, 0
  %v1019 = vsel %vm840, %v743, 0
  %v1022 = vsel %vm840, %v745, 0
  %v1025 = vsel %vm840, %v747, 0
  %v1028 = vsel %vm840, %v749, 0
  %v1031 = vsel %vm840, %v751, 0
  %v1034 = vsel %vm840, %v753, 0
  %v1037 = vsel %vm840, %v755, 0
  %v1040 = vsel %vm840, %v757, 0
  %v1043 = vsel %vm840, %v759, 0
  %v1046 = vsel %vm840, %v761, 0
  %v1049 = vsel %vm840, %v763, 0
  %v1052 = vsel %vm840, %v765, 0
  %v1055 = vsel %vm840, %v767, 0
  %1057 = vmatpush.bf16.msra.mxu0 %v43
  %1058 = vmatpush.bf16.msra.mxu0 %v42
  %1059 = vmatpush.bf16.msra.mxu0 %v41
  %1060 = vmatpush.bf16.msra.mxu0 %v40
  %1061 = vmatpush.bf16.msra.mxu0 %v39
  %1062 = vmatpush.bf16.msra.mxu0 %v38
  %1063 = vmatpush.bf16.msra.mxu0 %v37
  %1064 = vmatpush.bf16.msra.mxu0 %v36
  %1065 = vmatmul.bf16.gmra.mxu0 %v624
  %v1066 = vpop.f32.mrf.mxu0
  %v1067 = vadd.f32 0.0, %v1066
  %v1068 = vpop.f32.mrf.mxu0
  %v1069 = vadd.f32 0.0, %v1068
  %1070 = vmatmul.bf16.gmra.mxu0 %v626
  %v1071 = vpop.f32.mrf.mxu0
  %v1072 = vadd.f32 0.0, %v1071
  %v1073 = vpop.f32.mrf.mxu0
  %v1074 = vadd.f32 0.0, %v1073
  %1075 = vmatmul.bf16.gmra.mxu0 %v628
  %v1076 = vpop.f32.mrf.mxu0
  %v1077 = vadd.f32 0.0, %v1076
  %v1078 = vpop.f32.mrf.mxu0
  %v1079 = vadd.f32 0.0, %v1078
  %1080 = vmatmul.bf16.gmra.mxu0 %v630
  %v1081 = vpop.f32.mrf.mxu0
  %v1082 = vadd.f32 0.0, %v1081
  %v1083 = vpop.f32.mrf.mxu0
  %v1084 = vadd.f32 0.0, %v1083
  %1085 = vmatmul.bf16.gmra.mxu0 %v632
  %v1086 = vpop.f32.mrf.mxu0
  %v1087 = vadd.f32 0.0, %v1086
  %v1088 = vpop.f32.mrf.mxu0
  %v1089 = vadd.f32 0.0, %v1088
  %1090 = vmatmul.bf16.gmra.mxu0 %v634
  %v1091 = vpop.f32.mrf.mxu0
  %v1092 = vadd.f32 0.0, %v1091
  %v1093 = vpop.f32.mrf.mxu0
  %v1094 = vadd.f32 0.0, %v1093
  %1095 = vmatmul.bf16.gmra.mxu0 %v636
  %v1096 = vpop.f32.mrf.mxu0
  %v1097 = vadd.f32 0.0, %v1096
  %v1098 = vpop.f32.mrf.mxu0
  %v1099 = vadd.f32 0.0, %v1098
  %1100 = vmatmul.bf16.gmra.mxu0 %v638
  %v1101 = vpop.f32.mrf.mxu0
  %v1102 = vadd.f32 0.0, %v1101
  %v1103 = vpop.f32.mrf.mxu0
  %v1104 = vadd.f32 0.0, %v1103
  %1105 = vmatmul.bf16.gmra.mxu0 %v640
  %v1106 = vpop.f32.mrf.mxu0
  %v1107 = vadd.f32 0.0, %v1106
  %v1108 = vpop.f32.mrf.mxu0
  %v1109 = vadd.f32 0.0, %v1108
  %1110 = vmatmul.bf16.gmra.mxu0 %v642
  %v1111 = vpop.f32.mrf.mxu0
  %v1112 = vadd.f32 0.0, %v1111
  %v1113 = vpop.f32.mrf.mxu0
  %v1114 = vadd.f32 0.0, %v1113
  %1115 = vmatmul.bf16.gmra.mxu0 %v644
  %v1116 = vpop.f32.mrf.mxu0
  %v1117 = vadd.f32 0.0, %v1116
  %v1118 = vpop.f32.mrf.mxu0
  %v1119 = vadd.f32 0.0, %v1118
  %1120 = vmatmul.bf16.gmra.mxu0 %v646
  %v1121 = vpop.f32.mrf.mxu0
  %v1122 = vadd.f32 0.0, %v1121
  %v1123 = vpop.f32.mrf.mxu0
  %v1124 = vadd.f32 0.0, %v1123
  %1125 = vmatmul.bf16.gmra.mxu0 %v648
  %v1126 = vpop.f32.mrf.mxu0
  %v1127 = vadd.f32 0.0, %v1126
  %v1128 = vpop.f32.mrf.mxu0
  %v1129 = vadd.f32 0.0, %v1128
  %1130 = vmatmul.bf16.gmra.mxu0 %v650
  %v1131 = vpop.f32.mrf.mxu0
  %v1132 = vadd.f32 0.0, %v1131
  %v1133 = vpop.f32.mrf.mxu0
  %v1134 = vadd.f32 0.0, %v1133
  %1135 = vmatmul.bf16.gmra.mxu0 %v652
  %v1136 = vpop.f32.mrf.mxu0
  %v1137 = vadd.f32 0.0, %v1136
  %v1138 = vpop.f32.mrf.mxu0
  %v1139 = vadd.f32 0.0, %v1138
  %1140 = vmatmul.bf16.gmra.mxu0 %v654
  %v1141 = vpop.f32.mrf.mxu0
  %v1142 = vadd.f32 0.0, %v1141
  %v1143 = vpop.f32.mrf.mxu0
  %v1144 = vadd.f32 0.0, %v1143
  %1145 = vmatmul.bf16.gmra.mxu0 %v656
  %v1146 = vpop.f32.mrf.mxu0
  %v1147 = vadd.f32 0.0, %v1146
  %v1148 = vpop.f32.mrf.mxu0
  %v1149 = vadd.f32 0.0, %v1148
  %1150 = vmatmul.bf16.gmra.mxu0 %v658
  %v1151 = vpop.f32.mrf.mxu0
  %v1152 = vadd.f32 0.0, %v1151
  %v1153 = vpop.f32.mrf.mxu0
  %v1154 = vadd.f32 0.0, %v1153
  %1155 = vmatmul.bf16.gmra.mxu0 %v660
  %v1156 = vpop.f32.mrf.mxu0
  %v1157 = vadd.f32 0.0, %v1156
  %v1158 = vpop.f32.mrf.mxu0
  %v1159 = vadd.f32 0.0, %v1158
  %1160 = vmatmul.bf16.gmra.mxu0 %v662
  %v1161 = vpop.f32.mrf.mxu0
  %v1162 = vadd.f32 0.0, %v1161
  %v1163 = vpop.f32.mrf.mxu0
  %v1164 = vadd.f32 0.0, %v1163
  %1165 = vmatmul.bf16.gmra.mxu0 %v664
  %v1166 = vpop.f32.mrf.mxu0
  %v1167 = vadd.f32 0.0, %v1166
  %v1168 = vpop.f32.mrf.mxu0
  %v1169 = vadd.f32 0.0, %v1168
  %1170 = vmatmul.bf16.gmra.mxu0 %v666
  %v1171 = vpop.f32.mrf.mxu0
  %v1172 = vadd.f32 0.0, %v1171
  %v1173 = vpop.f32.mrf.mxu0
  %v1174 = vadd.f32 0.0, %v1173
  %1175 = vmatmul.bf16.gmra.mxu0 %v668
  %v1176 = vpop.f32.mrf.mxu0
  %v1177 = vadd.f32 0.0, %v1176
  %v1178 = vpop.f32.mrf.mxu0
  %v1179 = vadd.f32 0.0, %v1178
  %1180 = vmatmul.bf16.gmra.mxu0 %v670
  %v1181 = vpop.f32.mrf.mxu0
  %v1182 = vadd.f32 0.0, %v1181
  %v1183 = vpop.f32.mrf.mxu0
  %v1184 = vadd.f32 0.0, %v1183
  %1185 = vmatmul.bf16.gmra.mxu0 %v672
  %v1186 = vpop.f32.mrf.mxu0
  %v1187 = vadd.f32 0.0, %v1186
  %v1188 = vpop.f32.mrf.mxu0
  %v1189 = vadd.f32 0.0, %v1188
  %1190 = vmatmul.bf16.gmra.mxu0 %v674
  %v1191 = vpop.f32.mrf.mxu0
  %v1192 = vadd.f32 0.0, %v1191
  %v1193 = vpop.f32.mrf.mxu0
  %v1194 = vadd.f32 0.0, %v1193
  %1195 = vmatmul.bf16.gmra.mxu0 %v676
  %v1196 = vpop.f32.mrf.mxu0
  %v1197 = vadd.f32 0.0, %v1196
  %v1198 = vpop.f32.mrf.mxu0
  %v1199 = vadd.f32 0.0, %v1198
  %1200 = vmatmul.bf16.gmra.mxu0 %v678
  %v1201 = vpop.f32.mrf.mxu0
  %v1202 = vadd.f32 0.0, %v1201
  %v1203 = vpop.f32.mrf.mxu0
  %v1204 = vadd.f32 0.0, %v1203
  %1205 = vmatmul.bf16.gmra.mxu0 %v680
  %v1206 = vpop.f32.mrf.mxu0
  %v1207 = vadd.f32 0.0, %v1206
  %v1208 = vpop.f32.mrf.mxu0
  %v1209 = vadd.f32 0.0, %v1208
  %1210 = vmatmul.bf16.gmra.mxu0 %v682
  %v1211 = vpop.f32.mrf.mxu0
  %v1212 = vadd.f32 0.0, %v1211
  %v1213 = vpop.f32.mrf.mxu0
  %v1214 = vadd.f32 0.0, %v1213
  %1215 = vmatmul.bf16.gmra.mxu0 %v684
  %v1216 = vpop.f32.mrf.mxu0
  %v1217 = vadd.f32 0.0, %v1216
  %v1218 = vpop.f32.mrf.mxu0
  %v1219 = vadd.f32 0.0, %v1218
  %1220 = vmatmul.bf16.gmra.mxu0 %v686
  %v1221 = vpop.f32.mrf.mxu0
  %v1222 = vadd.f32 0.0, %v1221
  %v1223 = vpop.f32.mrf.mxu0
  %v1224 = vadd.f32 0.0, %v1223
  %1225 = vmatmul.bf16.gmra.mxu0 %v688
  %v1226 = vpop.f32.mrf.mxu0
  %v1227 = vadd.f32 0.0, %v1226
  %v1228 = vpop.f32.mrf.mxu0
  %v1229 = vadd.f32 0.0, %v1228
  %1230 = vmatmul.bf16.gmra.mxu0 %v690
  %v1231 = vpop.f32.mrf.mxu0
  %v1232 = vadd.f32 0.0, %v1231
  %v1233 = vpop.f32.mrf.mxu0
  %v1234 = vadd.f32 0.0, %v1233
  %1235 = vmatmul.bf16.gmra.mxu0 %v692
  %v1236 = vpop.f32.mrf.mxu0
  %v1237 = vadd.f32 0.0, %v1236
  %v1238 = vpop.f32.mrf.mxu0
  %v1239 = vadd.f32 0.0, %v1238
  %1240 = vmatmul.bf16.gmra.mxu0 %v694
  %v1241 = vpop.f32.mrf.mxu0
  %v1242 = vadd.f32 0.0, %v1241
  %v1243 = vpop.f32.mrf.mxu0
  %v1244 = vadd.f32 0.0, %v1243
  %1245 = vmatmul.bf16.gmra.mxu0 %v696
  %v1246 = vpop.f32.mrf.mxu0
  %v1247 = vadd.f32 0.0, %v1246
  %v1248 = vpop.f32.mrf.mxu0
  %v1249 = vadd.f32 0.0, %v1248
  %1250 = vmatmul.bf16.gmra.mxu0 %v698
  %v1251 = vpop.f32.mrf.mxu0
  %v1252 = vadd.f32 0.0, %v1251
  %v1253 = vpop.f32.mrf.mxu0
  %v1254 = vadd.f32 0.0, %v1253
  %1255 = vmatmul.bf16.gmra.mxu0 %v700
  %v1256 = vpop.f32.mrf.mxu0
  %v1257 = vadd.f32 0.0, %v1256
  %v1258 = vpop.f32.mrf.mxu0
  %v1259 = vadd.f32 0.0, %v1258
  %1260 = vmatmul.bf16.gmra.mxu0 %v702
  %v1261 = vpop.f32.mrf.mxu0
  %v1262 = vadd.f32 0.0, %v1261
  %v1263 = vpop.f32.mrf.mxu0
  %v1264 = vadd.f32 0.0, %v1263
  %1265 = vmatmul.bf16.gmra.mxu0 %v704
  %v1266 = vpop.f32.mrf.mxu0
  %v1267 = vadd.f32 0.0, %v1266
  %v1268 = vpop.f32.mrf.mxu0
  %v1269 = vadd.f32 0.0, %v1268
  %1270 = vmatmul.bf16.gmra.mxu0 %v706
  %v1271 = vpop.f32.mrf.mxu0
  %v1272 = vadd.f32 0.0, %v1271
  %v1273 = vpop.f32.mrf.mxu0
  %v1274 = vadd.f32 0.0, %v1273
  %1275 = vmatmul.bf16.gmra.mxu0 %v708
  %v1276 = vpop.f32.mrf.mxu0
  %v1277 = vadd.f32 0.0, %v1276
  %v1278 = vpop.f32.mrf.mxu0
  %v1279 = vadd.f32 0.0, %v1278
  %1280 = vmatmul.bf16.gmra.mxu0 %v710
  %v1281 = vpop.f32.mrf.mxu0
  %v1282 = vadd.f32 0.0, %v1281
  %v1283 = vpop.f32.mrf.mxu0
  %v1284 = vadd.f32 0.0, %v1283
  %1285 = vmatmul.bf16.gmra.mxu0 %v712
  %v1286 = vpop.f32.mrf.mxu0
  %v1287 = vadd.f32 0.0, %v1286
  %v1288 = vpop.f32.mrf.mxu0
  %v1289 = vadd.f32 0.0, %v1288
  %1290 = vmatmul.bf16.gmra.mxu0 %v714
  %v1291 = vpop.f32.mrf.mxu0
  %v1292 = vadd.f32 0.0, %v1291
  %v1293 = vpop.f32.mrf.mxu0
  %v1294 = vadd.f32 0.0, %v1293
  %1295 = vmatmul.bf16.gmra.mxu0 %v716
  %v1296 = vpop.f32.mrf.mxu0
  %v1297 = vadd.f32 0.0, %v1296
  %v1298 = vpop.f32.mrf.mxu0
  %v1299 = vadd.f32 0.0, %v1298
  %1300 = vmatmul.bf16.gmra.mxu0 %v718
  %v1301 = vpop.f32.mrf.mxu0
  %v1302 = vadd.f32 0.0, %v1301
  %v1303 = vpop.f32.mrf.mxu0
  %v1304 = vadd.f32 0.0, %v1303
  %1305 = vmatmul.bf16.gmra.mxu0 %v720
  %v1306 = vpop.f32.mrf.mxu0
  %v1307 = vadd.f32 0.0, %v1306
  %v1308 = vpop.f32.mrf.mxu0
  %v1309 = vadd.f32 0.0, %v1308
  %1310 = vmatmul.bf16.gmra.mxu0 %v722
  %v1311 = vpop.f32.mrf.mxu0
  %v1312 = vadd.f32 0.0, %v1311
  %v1313 = vpop.f32.mrf.mxu0
  %v1314 = vadd.f32 0.0, %v1313
  %1315 = vmatmul.bf16.gmra.mxu0 %v724
  %v1316 = vpop.f32.mrf.mxu0
  %v1317 = vadd.f32 0.0, %v1316
  %v1318 = vpop.f32.mrf.mxu0
  %v1319 = vadd.f32 0.0, %v1318
  %1320 = vmatmul.bf16.gmra.mxu0 %v726
  %v1321 = vpop.f32.mrf.mxu0
  %v1322 = vadd.f32 0.0, %v1321
  %v1323 = vpop.f32.mrf.mxu0
  %v1324 = vadd.f32 0.0, %v1323
  %1325 = vmatmul.bf16.gmra.mxu0 %v728
  %v1326 = vpop.f32.mrf.mxu0
  %v1327 = vadd.f32 0.0, %v1326
  %v1328 = vpop.f32.mrf.mxu0
  %v1329 = vadd.f32 0.0, %v1328
  %1330 = vmatmul.bf16.gmra.mxu0 %v730
  %v1331 = vpop.f32.mrf.mxu0
  %v1332 = vadd.f32 0.0, %v1331
  %v1333 = vpop.f32.mrf.mxu0
  %v1334 = vadd.f32 0.0, %v1333
  %1335 = vmatmul.bf16.gmra.mxu0 %v732
  %v1336 = vpop.f32.mrf.mxu0
  %v1337 = vadd.f32 0.0, %v1336
  %v1338 = vpop.f32.mrf.mxu0
  %v1339 = vadd.f32 0.0, %v1338
  %1340 = vmatmul.bf16.gmra.mxu0 %v734
  %v1341 = vpop.f32.mrf.mxu0
  %v1342 = vadd.f32 0.0, %v1341
  %v1343 = vpop.f32.mrf.mxu0
  %v1344 = vadd.f32 0.0, %v1343
  %1345 = vmatmul.bf16.gmra.mxu0 %v736
  %v1346 = vpop.f32.mrf.mxu0
  %v1347 = vadd.f32 0.0, %v1346
  %v1348 = vpop.f32.mrf.mxu0
  %v1349 = vadd.f32 0.0, %v1348
  %1350 = vmatmul.bf16.gmra.mxu0 %v738
  %v1351 = vpop.f32.mrf.mxu0
  %v1352 = vadd.f32 0.0, %v1351
  %v1353 = vpop.f32.mrf.mxu0
  %v1354 = vadd.f32 0.0, %v1353
  %1355 = vmatmul.bf16.gmra.mxu0 %v740
  %v1356 = vpop.f32.mrf.mxu0
  %v1357 = vadd.f32 0.0, %v1356
  %v1358 = vpop.f32.mrf.mxu0
  %v1359 = vadd.f32 0.0, %v1358
  %1360 = vmatmul.bf16.gmra.mxu0 %v742
  %v1361 = vpop.f32.mrf.mxu0
  %v1362 = vadd.f32 0.0, %v1361
  %v1363 = vpop.f32.mrf.mxu0
  %v1364 = vadd.f32 0.0, %v1363
  %1365 = vmatmul.bf16.gmra.mxu0 %v744
  %v1366 = vpop.f32.mrf.mxu0
  %v1367 = vadd.f32 0.0, %v1366
  %v1368 = vpop.f32.mrf.mxu0
  %v1369 = vadd.f32 0.0, %v1368
  %1370 = vmatmul.bf16.gmra.mxu0 %v746
  %v1371 = vpop.f32.mrf.mxu0
  %v1372 = vadd.f32 0.0, %v1371
  %v1373 = vpop.f32.mrf.mxu0
  %v1374 = vadd.f32 0.0, %v1373
  %1375 = vmatmul.bf16.gmra.mxu0 %v748
  %v1376 = vpop.f32.mrf.mxu0
  %v1377 = vadd.f32 0.0, %v1376
  %v1378 = vpop.f32.mrf.mxu0
  %v1379 = vadd.f32 0.0, %v1378
  %1380 = vmatmul.bf16.gmra.mxu0 %v750
  %v1381 = vpop.f32.mrf.mxu0
  %v1382 = vadd.f32 0.0, %v1381
  %v1383 = vpop.f32.mrf.mxu0
  %v1384 = vadd.f32 0.0, %v1383
  %1385 = vmatmul.bf16.gmra.mxu0 %v752
  %v1386 = vpop.f32.mrf.mxu0
  %v1387 = vadd.f32 0.0, %v1386
  %v1388 = vpop.f32.mrf.mxu0
  %v1389 = vadd.f32 0.0, %v1388
  %1390 = vmatmul.bf16.gmra.mxu0 %v754
  %v1391 = vpop.f32.mrf.mxu0
  %v1392 = vadd.f32 0.0, %v1391
  %v1393 = vpop.f32.mrf.mxu0
  %v1394 = vadd.f32 0.0, %v1393
  %1395 = vmatmul.bf16.gmra.mxu0 %v756
  %v1396 = vpop.f32.mrf.mxu0
  %v1397 = vadd.f32 0.0, %v1396
  %v1398 = vpop.f32.mrf.mxu0
  %v1399 = vadd.f32 0.0, %v1398
  %1400 = vmatmul.bf16.gmra.mxu0 %v758
  %v1401 = vpop.f32.mrf.mxu0
  %v1402 = vadd.f32 0.0, %v1401
  %v1403 = vpop.f32.mrf.mxu0
  %v1404 = vadd.f32 0.0, %v1403
  %1405 = vmatmul.bf16.gmra.mxu0 %v760
  %v1406 = vpop.f32.mrf.mxu0
  %v1407 = vadd.f32 0.0, %v1406
  %v1408 = vpop.f32.mrf.mxu0
  %v1409 = vadd.f32 0.0, %v1408
  %1410 = vmatmul.bf16.gmra.mxu0 %v762
  %v1411 = vpop.f32.mrf.mxu0
  %v1412 = vadd.f32 0.0, %v1411
  %v1413 = vpop.f32.mrf.mxu0
  %v1414 = vadd.f32 0.0, %v1413
  %1415 = vmatmul.bf16.gmra.mxu0 %v764
  %v1416 = vpop.f32.mrf.mxu0
  %v1417 = vadd.f32 0.0, %v1416
  %v1418 = vpop.f32.mrf.mxu0
  %v1419 = vadd.f32 0.0, %v1418
  %1420 = vmatmul.bf16.gmra.mxu0 %v766
  %v1421 = vpop.f32.mrf.mxu0
  %v1422 = vadd.f32 0.0, %v1421
  %v1423 = vpop.f32.mrf.mxu0
  %v1424 = vadd.f32 0.0, %v1423
  %1425 = vdwg.mxu0
  %1426 = vmatpush.bf16.msra.mxu0 0
  %1427 = vmatpush.bf16.msra.mxu0 0
  %1428 = vmatpush.bf16.msra.mxu0 0
  %1429 = vmatpush.bf16.msra.mxu0 0
  %1430 = vmatpush.bf16.msra.mxu0 %v47
  %1431 = vmatpush.bf16.msra.mxu0 %v46
  %1432 = vmatpush.bf16.msra.mxu0 %v45
  %1433 = vmatpush.bf16.msra.mxu0 %v44
  %1434 = vmatmul.bf16.gmra.mxu0 %v842
  %v1435 = vpop.f32.mrf.mxu0
  %v1436 = vadd.f32 %v1067, %v1435
  %v1437 = vpop.f32.mrf.mxu0
  %v1438 = vadd.f32 %v1069, %v1437
  %1439 = vmatmul.bf16.gmra.mxu0 %v845
  %v1440 = vpop.f32.mrf.mxu0
  %v1441 = vadd.f32 %v1072, %v1440
  %v1442 = vpop.f32.mrf.mxu0
  %v1443 = vadd.f32 %v1074, %v1442
  %1444 = vmatmul.bf16.gmra.mxu0 %v848
  %v1445 = vpop.f32.mrf.mxu0
  %v1446 = vadd.f32 %v1077, %v1445
  %v1447 = vpop.f32.mrf.mxu0
  %v1448 = vadd.f32 %v1079, %v1447
  %1449 = vmatmul.bf16.gmra.mxu0 %v851
  %v1450 = vpop.f32.mrf.mxu0
  %v1451 = vadd.f32 %v1082, %v1450
  %v1452 = vpop.f32.mrf.mxu0
  %v1453 = vadd.f32 %v1084, %v1452
  %1454 = vmatmul.bf16.gmra.mxu0 %v854
  %v1455 = vpop.f32.mrf.mxu0
  %v1456 = vadd.f32 %v1087, %v1455
  %v1457 = vpop.f32.mrf.mxu0
  %v1458 = vadd.f32 %v1089, %v1457
  %1459 = vmatmul.bf16.gmra.mxu0 %v857
  %v1460 = vpop.f32.mrf.mxu0
  %v1461 = vadd.f32 %v1092, %v1460
  %v1462 = vpop.f32.mrf.mxu0
  %v1463 = vadd.f32 %v1094, %v1462
  %1464 = vmatmul.bf16.gmra.mxu0 %v860
  %v1465 = vpop.f32.mrf.mxu0
  %v1466 = vadd.f32 %v1097, %v1465
  %v1467 = vpop.f32.mrf.mxu0
  %v1468 = vadd.f32 %v1099, %v1467
  %1469 = vmatmul.bf16.gmra.mxu0 %v863
  %v1470 = vpop.f32.mrf.mxu0
  %v1471 = vadd.f32 %v1102, %v1470
  %v1472 = vpop.f32.mrf.mxu0
  %v1473 = vadd.f32 %v1104, %v1472
  %1474 = vmatmul.bf16.gmra.mxu0 %v866
  %v1475 = vpop.f32.mrf.mxu0
  %v1476 = vadd.f32 %v1107, %v1475
  %v1477 = vpop.f32.mrf.mxu0
  %v1478 = vadd.f32 %v1109, %v1477
  %1479 = vmatmul.bf16.gmra.mxu0 %v869
  %v1480 = vpop.f32.mrf.mxu0
  %v1481 = vadd.f32 %v1112, %v1480
  %v1482 = vpop.f32.mrf.mxu0
  %v1483 = vadd.f32 %v1114, %v1482
  %1484 = vmatmul.bf16.gmra.mxu0 %v872
  %v1485 = vpop.f32.mrf.mxu0
  %v1486 = vadd.f32 %v1117, %v1485
  %v1487 = vpop.f32.mrf.mxu0
  %v1488 = vadd.f32 %v1119, %v1487
  %1489 = vmatmul.bf16.gmra.mxu0 %v875
  %v1490 = vpop.f32.mrf.mxu0
  %v1491 = vadd.f32 %v1122, %v1490
  %v1492 = vpop.f32.mrf.mxu0
  %v1493 = vadd.f32 %v1124, %v1492
  %1494 = vmatmul.bf16.gmra.mxu0 %v878
  %v1495 = vpop.f32.mrf.mxu0
  %v1496 = vadd.f32 %v1127, %v1495
  %v1497 = vpop.f32.mrf.mxu0
  %v1498 = vadd.f32 %v1129, %v1497
  %1499 = vmatmul.bf16.gmra.mxu0 %v881
  %v1500 = vpop.f32.mrf.mxu0
  %v1501 = vadd.f32 %v1132, %v1500
  %v1502 = vpop.f32.mrf.mxu0
  %v1503 = vadd.f32 %v1134, %v1502
  %1504 = vmatmul.bf16.gmra.mxu0 %v884
  %v1505 = vpop.f32.mrf.mxu0
  %v1506 = vadd.f32 %v1137, %v1505
  %v1507 = vpop.f32.mrf.mxu0
  %v1508 = vadd.f32 %v1139, %v1507
  %1509 = vmatmul.bf16.gmra.mxu0 %v887
  %v1510 = vpop.f32.mrf.mxu0
  %v1511 = vadd.f32 %v1142, %v1510
  %v1512 = vpop.f32.mrf.mxu0
  %v1513 = vadd.f32 %v1144, %v1512
  %1514 = vmatmul.bf16.gmra.mxu0 %v890
  %v1515 = vpop.f32.mrf.mxu0
  %v1516 = vadd.f32 %v1147, %v1515
  %v1517 = vpop.f32.mrf.mxu0
  %v1518 = vadd.f32 %v1149, %v1517
  %1519 = vmatmul.bf16.gmra.mxu0 %v893
  %v1520 = vpop.f32.mrf.mxu0
  %v1521 = vadd.f32 %v1152, %v1520
  %v1522 = vpop.f32.mrf.mxu0
  %v1523 = vadd.f32 %v1154, %v1522
  %1524 = vmatmul.bf16.gmra.mxu0 %v896
  %v1525 = vpop.f32.mrf.mxu0
  %v1526 = vadd.f32 %v1157, %v1525
  %v1527 = vpop.f32.mrf.mxu0
  %v1528 = vadd.f32 %v1159, %v1527
  %1529 = vmatmul.bf16.gmra.mxu0 %v899
  %v1530 = vpop.f32.mrf.mxu0
  %v1531 = vadd.f32 %v1162, %v1530
  %v1532 = vpop.f32.mrf.mxu0
  %v1533 = vadd.f32 %v1164, %v1532
  %1534 = vmatmul.bf16.gmra.mxu0 %v902
  %v1535 = vpop.f32.mrf.mxu0
  %v1536 = vadd.f32 %v1167, %v1535
  %v1537 = vpop.f32.mrf.mxu0
  %v1538 = vadd.f32 %v1169, %v1537
  %1539 = vmatmul.bf16.gmra.mxu0 %v905
  %v1540 = vpop.f32.mrf.mxu0
  %v1541 = vadd.f32 %v1172, %v1540
  %v1542 = vpop.f32.mrf.mxu0
  %v1543 = vadd.f32 %v1174, %v1542
  %1544 = vmatmul.bf16.gmra.mxu0 %v908
  %v1545 = vpop.f32.mrf.mxu0
  %v1546 = vadd.f32 %v1177, %v1545
  %v1547 = vpop.f32.mrf.mxu0
  %v1548 = vadd.f32 %v1179, %v1547
  %1549 = vmatmul.bf16.gmra.mxu0 %v911
  %v1550 = vpop.f32.mrf.mxu0
  %v1551 = vadd.f32 %v1182, %v1550
  %v1552 = vpop.f32.mrf.mxu0
  %v1553 = vadd.f32 %v1184, %v1552
  %1554 = vmatmul.bf16.gmra.mxu0 %v914
  %v1555 = vpop.f32.mrf.mxu0
  %v1556 = vadd.f32 %v1187, %v1555
  %v1557 = vpop.f32.mrf.mxu0
  %v1558 = vadd.f32 %v1189, %v1557
  %1559 = vmatmul.bf16.gmra.mxu0 %v917
  %v1560 = vpop.f32.mrf.mxu0
  %v1561 = vadd.f32 %v1192, %v1560
  %v1562 = vpop.f32.mrf.mxu0
  %v1563 = vadd.f32 %v1194, %v1562
  %1564 = vmatmul.bf16.gmra.mxu0 %v920
  %v1565 = vpop.f32.mrf.mxu0
  %v1566 = vadd.f32 %v1197, %v1565
  %v1567 = vpop.f32.mrf.mxu0
  %v1568 = vadd.f32 %v1199, %v1567
  %1569 = vmatmul.bf16.gmra.mxu0 %v923
  %v1570 = vpop.f32.mrf.mxu0
  %v1571 = vadd.f32 %v1202, %v1570
  %v1572 = vpop.f32.mrf.mxu0
  %v1573 = vadd.f32 %v1204, %v1572
  %1574 = vmatmul.bf16.gmra.mxu0 %v926
  %v1575 = vpop.f32.mrf.mxu0
  %v1576 = vadd.f32 %v1207, %v1575
  %v1577 = vpop.f32.mrf.mxu0
  %v1578 = vadd.f32 %v1209, %v1577
  %1579 = vmatmul.bf16.gmra.mxu0 %v929
  %v1580 = vpop.f32.mrf.mxu0
  %v1581 = vadd.f32 %v1212, %v1580
  %v1582 = vpop.f32.mrf.mxu0
  %v1583 = vadd.f32 %v1214, %v1582
  %1584 = vmatmul.bf16.gmra.mxu0 %v932
  %v1585 = vpop.f32.mrf.mxu0
  %v1586 = vadd.f32 %v1217, %v1585
  %v1587 = vpop.f32.mrf.mxu0
  %v1588 = vadd.f32 %v1219, %v1587
  %1589 = vmatmul.bf16.gmra.mxu0 %v935
  %v1590 = vpop.f32.mrf.mxu0
  %v1591 = vadd.f32 %v1222, %v1590
  %v1592 = vpop.f32.mrf.mxu0
  %v1593 = vadd.f32 %v1224, %v1592
  %1594 = vmatmul.bf16.gmra.mxu0 %v938
  %v1595 = vpop.f32.mrf.mxu0
  %v1596 = vadd.f32 %v1227, %v1595
  %v1597 = vpop.f32.mrf.mxu0
  %v1598 = vadd.f32 %v1229, %v1597
  %1599 = vmatmul.bf16.gmra.mxu0 %v941
  %v1600 = vpop.f32.mrf.mxu0
  %v1601 = vadd.f32 %v1232, %v1600
  %v1602 = vpop.f32.mrf.mxu0
  %v1603 = vadd.f32 %v1234, %v1602
  %1604 = vmatmul.bf16.gmra.mxu0 %v944
  %v1605 = vpop.f32.mrf.mxu0
  %v1606 = vadd.f32 %v1237, %v1605
  %v1607 = vpop.f32.mrf.mxu0
  %v1608 = vadd.f32 %v1239, %v1607
  %1609 = vmatmul.bf16.gmra.mxu0 %v947
  %v1610 = vpop.f32.mrf.mxu0
  %v1611 = vadd.f32 %v1242, %v1610
  %v1612 = vpop.f32.mrf.mxu0
  %v1613 = vadd.f32 %v1244, %v1612
  %1614 = vmatmul.bf16.gmra.mxu0 %v950
  %v1615 = vpop.f32.mrf.mxu0
  %v1616 = vadd.f32 %v1247, %v1615
  %v1617 = vpop.f32.mrf.mxu0
  %v1618 = vadd.f32 %v1249, %v1617
  %1619 = vmatmul.bf16.gmra.mxu0 %v953
  %v1620 = vpop.f32.mrf.mxu0
  %v1621 = vadd.f32 %v1252, %v1620
  %v1622 = vpop.f32.mrf.mxu0
  %v1623 = vadd.f32 %v1254, %v1622
  %1624 = vmatmul.bf16.gmra.mxu0 %v956
  %v1625 = vpop.f32.mrf.mxu0
  %v1626 = vadd.f32 %v1257, %v1625
  %v1627 = vpop.f32.mrf.mxu0
  %v1628 = vadd.f32 %v1259, %v1627
  %1629 = vmatmul.bf16.gmra.mxu0 %v959
  %v1630 = vpop.f32.mrf.mxu0
  %v1631 = vadd.f32 %v1262, %v1630
  %v1632 = vpop.f32.mrf.mxu0
  %v1633 = vadd.f32 %v1264, %v1632
  %1634 = vmatmul.bf16.gmra.mxu0 %v962
  %v1635 = vpop.f32.mrf.mxu0
  %v1636 = vadd.f32 %v1267, %v1635
  %v1637 = vpop.f32.mrf.mxu0
  %v1638 = vadd.f32 %v1269, %v1637
  %1639 = vmatmul.bf16.gmra.mxu0 %v965
  %v1640 = vpop.f32.mrf.mxu0
  %v1641 = vadd.f32 %v1272, %v1640
  %v1642 = vpop.f32.mrf.mxu0
  %v1643 = vadd.f32 %v1274, %v1642
  %1644 = vmatmul.bf16.gmra.mxu0 %v968
  %v1645 = vpop.f32.mrf.mxu0
  %v1646 = vadd.f32 %v1277, %v1645
  %v1647 = vpop.f32.mrf.mxu0
  %v1648 = vadd.f32 %v1279, %v1647
  %1649 = vmatmul.bf16.gmra.mxu0 %v971
  %v1650 = vpop.f32.mrf.mxu0
  %v1651 = vadd.f32 %v1282, %v1650
  %v1652 = vpop.f32.mrf.mxu0
  %v1653 = vadd.f32 %v1284, %v1652
  %1654 = vmatmul.bf16.gmra.mxu0 %v974
  %v1655 = vpop.f32.mrf.mxu0
  %v1656 = vadd.f32 %v1287, %v1655
  %v1657 = vpop.f32.mrf.mxu0
  %v1658 = vadd.f32 %v1289, %v1657
  %1659 = vmatmul.bf16.gmra.mxu0 %v977
  %v1660 = vpop.f32.mrf.mxu0
  %v1661 = vadd.f32 %v1292, %v1660
  %v1662 = vpop.f32.mrf.mxu0
  %v1663 = vadd.f32 %v1294, %v1662
  %1664 = vmatmul.bf16.gmra.mxu0 %v980
  %v1665 = vpop.f32.mrf.mxu0
  %v1666 = vadd.f32 %v1297, %v1665
  %v1667 = vpop.f32.mrf.mxu0
  %v1668 = vadd.f32 %v1299, %v1667
  %1669 = vmatmul.bf16.gmra.mxu0 %v983
  %v1670 = vpop.f32.mrf.mxu0
  %v1671 = vadd.f32 %v1302, %v1670
  %v1672 = vpop.f32.mrf.mxu0
  %v1673 = vadd.f32 %v1304, %v1672
  %1674 = vmatmul.bf16.gmra.mxu0 %v986
  %v1675 = vpop.f32.mrf.mxu0
  %v1676 = vadd.f32 %v1307, %v1675
  %v1677 = vpop.f32.mrf.mxu0
  %v1678 = vadd.f32 %v1309, %v1677
  %1679 = vmatmul.bf16.gmra.mxu0 %v989
  %v1680 = vpop.f32.mrf.mxu0
  %v1681 = vadd.f32 %v1312, %v1680
  %v1682 = vpop.f32.mrf.mxu0
  %v1683 = vadd.f32 %v1314, %v1682
  %1684 = vmatmul.bf16.gmra.mxu0 %v992
  %v1685 = vpop.f32.mrf.mxu0
  %v1686 = vadd.f32 %v1317, %v1685
  %v1687 = vpop.f32.mrf.mxu0
  %v1688 = vadd.f32 %v1319, %v1687
  %1689 = vmatmul.bf16.gmra.mxu0 %v995
  %v1690 = vpop.f32.mrf.mxu0
  %v1691 = vadd.f32 %v1322, %v1690
  %v1692 = vpop.f32.mrf.mxu0
  %v1693 = vadd.f32 %v1324, %v1692
  %1694 = vmatmul.bf16.gmra.mxu0 %v998
  %v1695 = vpop.f32.mrf.mxu0
  %v1696 = vadd.f32 %v1327, %v1695
  %v1697 = vpop.f32.mrf.mxu0
  %v1698 = vadd.f32 %v1329, %v1697
  %1699 = vmatmul.bf16.gmra.mxu0 %v1001
  %v1700 = vpop.f32.mrf.mxu0
  %v1701 = vadd.f32 %v1332, %v1700
  %v1702 = vpop.f32.mrf.mxu0
  %v1703 = vadd.f32 %v1334, %v1702
  %1704 = vmatmul.bf16.gmra.mxu0 %v1004
  %v1705 = vpop.f32.mrf.mxu0
  %v1706 = vadd.f32 %v1337, %v1705
  %v1707 = vpop.f32.mrf.mxu0
  %v1708 = vadd.f32 %v1339, %v1707
  %1709 = vmatmul.bf16.gmra.mxu0 %v1007
  %v1710 = vpop.f32.mrf.mxu0
  %v1711 = vadd.f32 %v1342, %v1710
  %v1712 = vpop.f32.mrf.mxu0
  %v1713 = vadd.f32 %v1344, %v1712
  %1714 = vmatmul.bf16.gmra.mxu0 %v1010
  %v1715 = vpop.f32.mrf.mxu0
  %v1716 = vadd.f32 %v1347, %v1715
  %v1717 = vpop.f32.mrf.mxu0
  %v1718 = vadd.f32 %v1349, %v1717
  %1719 = vmatmul.bf16.gmra.mxu0 %v1013
  %v1720 = vpop.f32.mrf.mxu0
  %v1721 = vadd.f32 %v1352, %v1720
  %v1722 = vpop.f32.mrf.mxu0
  %v1723 = vadd.f32 %v1354, %v1722
  %1724 = vmatmul.bf16.gmra.mxu0 %v1016
  %v1725 = vpop.f32.mrf.mxu0
  %v1726 = vadd.f32 %v1357, %v1725
  %v1727 = vpop.f32.mrf.mxu0
  %v1728 = vadd.f32 %v1359, %v1727
  %1729 = vmatmul.bf16.gmra.mxu0 %v1019
  %v1730 = vpop.f32.mrf.mxu0
  %v1731 = vadd.f32 %v1362, %v1730
  %v1732 = vpop.f32.mrf.mxu0
  %v1733 = vadd.f32 %v1364, %v1732
  %1734 = vmatmul.bf16.gmra.mxu0 %v1022
  %v1735 = vpop.f32.mrf.mxu0
  %v1736 = vadd.f32 %v1367, %v1735
  %v1737 = vpop.f32.mrf.mxu0
  %v1738 = vadd.f32 %v1369, %v1737
  %1739 = vmatmul.bf16.gmra.mxu0 %v1025
  %v1740 = vpop.f32.mrf.mxu0
  %v1741 = vadd.f32 %v1372, %v1740
  %v1742 = vpop.f32.mrf.mxu0
  %v1743 = vadd.f32 %v1374, %v1742
  %1744 = vmatmul.bf16.gmra.mxu0 %v1028
  %v1745 = vpop.f32.mrf.mxu0
  %v1746 = vadd.f32 %v1377, %v1745
  %v1747 = vpop.f32.mrf.mxu0
  %v1748 = vadd.f32 %v1379, %v1747
  %1749 = vmatmul.bf16.gmra.mxu0 %v1031
  %v1750 = vpop.f32.mrf.mxu0
  %v1751 = vadd.f32 %v1382, %v1750
  %v1752 = vpop.f32.mrf.mxu0
  %v1753 = vadd.f32 %v1384, %v1752
  %1754 = vmatmul.bf16.gmra.mxu0 %v1034
  %v1755 = vpop.f32.mrf.mxu0
  %v1756 = vadd.f32 %v1387, %v1755
  %v1757 = vpop.f32.mrf.mxu0
  %v1758 = vadd.f32 %v1389, %v1757
  %1759 = vmatmul.bf16.gmra.mxu0 %v1037
  %v1760 = vpop.f32.mrf.mxu0
  %v1761 = vadd.f32 %v1392, %v1760
  %v1762 = vpop.f32.mrf.mxu0
  %v1763 = vadd.f32 %v1394, %v1762
  %1764 = vmatmul.bf16.gmra.mxu0 %v1040
  %v1765 = vpop.f32.mrf.mxu0
  %v1766 = vadd.f32 %v1397, %v1765
  %v1767 = vpop.f32.mrf.mxu0
  %v1768 = vadd.f32 %v1399, %v1767
  %1769 = vmatmul.bf16.gmra.mxu0 %v1043
  %v1770 = vpop.f32.mrf.mxu0
  %v1771 = vadd.f32 %v1402, %v1770
  %v1772 = vpop.f32.mrf.mxu0
  %v1773 = vadd.f32 %v1404, %v1772
  %1774 = vmatmul.bf16.gmra.mxu0 %v1046
  %v1775 = vpop.f32.mrf.mxu0
  %v1776 = vadd.f32 %v1407, %v1775
  %v1777 = vpop.f32.mrf.mxu0
  %v1778 = vadd.f32 %v1409, %v1777
  %1779 = vmatmul.bf16.gmra.mxu0 %v1049
  %v1780 = vpop.f32.mrf.mxu0
  %v1781 = vadd.f32 %v1412, %v1780
  %v1782 = vpop.f32.mrf.mxu0
  %v1783 = vadd.f32 %v1414, %v1782
  %1784 = vmatmul.bf16.gmra.mxu0 %v1052
  %v1785 = vpop.f32.mrf.mxu0
  %v1786 = vadd.f32 %v1417, %v1785
  %v1787 = vpop.f32.mrf.mxu0
  %v1788 = vadd.f32 %v1419, %v1787
  %1789 = vmatmul.bf16.gmra.mxu0 %v1055
  %v1790 = vpop.f32.mrf.mxu0
  %v1791 = vadd.f32 %v1422, %v1790
  %v1792 = vpop.f32.mrf.mxu0
  %v1793 = vadd.f32 %v1424, %v1792
  %1794 = vdwg.mxu0
  %vm1795 = vcmask 400384
  %1796 = vst.msk [vmem:[%s2] sm:$0xff] %vm1795, %v1436
  %1797 = vst.msk [vmem:[%s2 + $0x8] sm:$0xff] %vm1795, %v1438
  %1798 = vst.msk [vmem:[%s2 + $0x10] sm:$0xff] %vm1795, %v1441
  %1799 = vst.msk [vmem:[%s2 + $0x18] sm:$0xff] %vm1795, %v1443
  %1800 = vst.msk [vmem:[%s2 + $0x20] sm:$0xff] %vm1795, %v1446
  %1801 = vst.msk [vmem:[%s2 + $0x28] sm:$0xff] %vm1795, %v1448
  %1802 = vst.msk [vmem:[%s2 + $0x30] sm:$0xff] %vm1795, %v1451
  %1803 = vst.msk [vmem:[%s2 + $0x38] sm:$0xff] %vm1795, %v1453
  %1804 = vst.msk [vmem:[%s2 + $0x40] sm:$0xff] %vm1795, %v1456
  %1805 = vst.msk [vmem:[%s2 + $0x48] sm:$0xff] %vm1795, %v1458
  %1806 = vst.msk [vmem:[%s2 + $0x50] sm:$0xff] %vm1795, %v1461
  %1807 = vst.msk [vmem:[%s2 + $0x58] sm:$0xff] %vm1795, %v1463
  %1808 = vst.msk [vmem:[%s2 + $0x60] sm:$0xff] %vm1795, %v1466
  %1809 = vst.msk [vmem:[%s2 + $0x68] sm:$0xff] %vm1795, %v1468
  %1810 = vst.msk [vmem:[%s2 + $0x70] sm:$0xff] %vm1795, %v1471
  %1811 = vst.msk [vmem:[%s2 + $0x78] sm:$0xff] %vm1795, %v1473
  %1812 = vst.msk [vmem:[%s2 + $0x80] sm:$0xff] %vm1795, %v1476
  %1813 = vst.msk [vmem:[%s2 + $0x88] sm:$0xff] %vm1795, %v1478
  %1814 = vst.msk [vmem:[%s2 + $0x90] sm:$0xff] %vm1795, %v1481
  %1815 = vst.msk [vmem:[%s2 + $0x98] sm:$0xff] %vm1795, %v1483
  %1816 = vst.msk [vmem:[%s2 + $0xa0] sm:$0xff] %vm1795, %v1486
  %1817 = vst.msk [vmem:[%s2 + $0xa8] sm:$0xff] %vm1795, %v1488
  %1818 = vst.msk [vmem:[%s2 + $0xb0] sm:$0xff] %vm1795, %v1491
  %1819 = vst.msk [vmem:[%s2 + $0xb8] sm:$0xff] %vm1795, %v1493
  %1820 = vst.msk [vmem:[%s2 + $0xc0] sm:$0xff] %vm1795, %v1496
  %1821 = vst.msk [vmem:[%s2 + $0xc8] sm:$0xff] %vm1795, %v1498
  %1822 = vst.msk [vmem:[%s2 + $0xd0] sm:$0xff] %vm1795, %v1501
  %1823 = vst.msk [vmem:[%s2 + $0xd8] sm:$0xff] %vm1795, %v1503
  %1824 = vst.msk [vmem:[%s2 + $0xe0] sm:$0xff] %vm1795, %v1506
  %1825 = vst.msk [vmem:[%s2 + $0xe8] sm:$0xff] %vm1795, %v1508
  %1826 = vst.msk [vmem:[%s2 + $0xf0] sm:$0xff] %vm1795, %v1511
  %1827 = vst.msk [vmem:[%s2 + $0xf8] sm:$0xff] %vm1795, %v1513
  %1828 = vst.msk [vmem:[%s2 + $0x100] sm:$0xff] %vm1795, %v1516
  %1829 = vst.msk [vmem:[%s2 + $0x108] sm:$0xff] %vm1795, %v1518
  %1830 = vst.msk [vmem:[%s2 + $0x110] sm:$0xff] %vm1795, %v1521
  %1831 = vst.msk [vmem:[%s2 + $0x118] sm:$0xff] %vm1795, %v1523
  %1832 = vst.msk [vmem:[%s2 + $0x120] sm:$0xff] %vm1795, %v1526
  %1833 = vst.msk [vmem:[%s2 + $0x128] sm:$0xff] %vm1795, %v1528
  %1834 = vst.msk [vmem:[%s2 + $0x130] sm:$0xff] %vm1795, %v1531
  %1835 = vst.msk [vmem:[%s2 + $0x138] sm:$0xff] %vm1795, %v1533
  %1836 = vst.msk [vmem:[%s2 + $0x140] sm:$0xff] %vm1795, %v1536
  %1837 = vst.msk [vmem:[%s2 + $0x148] sm:$0xff] %vm1795, %v1538
  %1838 = vst.msk [vmem:[%s2 + $0x150] sm:$0xff] %vm1795, %v1541
  %1839 = vst.msk [vmem:[%s2 + $0x158] sm:$0xff] %vm1795, %v1543
  %1840 = vst.msk [vmem:[%s2 + $0x160] sm:$0xff] %vm1795, %v1546
  %1841 = vst.msk [vmem:[%s2 + $0x168] sm:$0xff] %vm1795, %v1548
  %1842 = vst.msk [vmem:[%s2 + $0x170] sm:$0xff] %vm1795, %v1551
  %1843 = vst.msk [vmem:[%s2 + $0x178] sm:$0xff] %vm1795, %v1553
  %1844 = vst.msk [vmem:[%s2 + $0x180] sm:$0xff] %vm1795, %v1556
  %1845 = vst.msk [vmem:[%s2 + $0x188] sm:$0xff] %vm1795, %v1558
  %1846 = vst.msk [vmem:[%s2 + $0x190] sm:$0xff] %vm1795, %v1561
  %1847 = vst.msk [vmem:[%s2 + $0x198] sm:$0xff] %vm1795, %v1563
  %1848 = vst.msk [vmem:[%s2 + $0x1a0] sm:$0xff] %vm1795, %v1566
  %1849 = vst.msk [vmem:[%s2 + $0x1a8] sm:$0xff] %vm1795, %v1568
  %1850 = vst.msk [vmem:[%s2 + $0x1b0] sm:$0xff] %vm1795, %v1571
  %1851 = vst.msk [vmem:[%s2 + $0x1b8] sm:$0xff] %vm1795, %v1573
  %1852 = vst.msk [vmem:[%s2 + $0x1c0] sm:$0xff] %vm1795, %v1576
  %1853 = vst.msk [vmem:[%s2 + $0x1c8] sm:$0xff] %vm1795, %v1578
  %1854 = vst.msk [vmem:[%s2 + $0x1d0] sm:$0xff] %vm1795, %v1581
  %1855 = vst.msk [vmem:[%s2 + $0x1d8] sm:$0xff] %vm1795, %v1583
  %1856 = vst.msk [vmem:[%s2 + $0x1e0] sm:$0xff] %vm1795, %v1586
  %1857 = vst.msk [vmem:[%s2 + $0x1e8] sm:$0xff] %vm1795, %v1588
  %1858 = vst.msk [vmem:[%s2 + $0x1f0] sm:$0xff] %vm1795, %v1591
  %1859 = vst.msk [vmem:[%s2 + $0x1f8] sm:$0xff] %vm1795, %v1593
  %1860 = vst.msk [vmem:[%s2 + $0x200] sm:$0xff] %vm1795, %v1596
  %1861 = vst.msk [vmem:[%s2 + $0x208] sm:$0xff] %vm1795, %v1598
  %1862 = vst.msk [vmem:[%s2 + $0x210] sm:$0xff] %vm1795, %v1601
  %1863 = vst.msk [vmem:[%s2 + $0x218] sm:$0xff] %vm1795, %v1603
  %1864 = vst.msk [vmem:[%s2 + $0x220] sm:$0xff] %vm1795, %v1606
  %1865 = vst.msk [vmem:[%s2 + $0x228] sm:$0xff] %vm1795, %v1608
  %1866 = vst.msk [vmem:[%s2 + $0x230] sm:$0xff] %vm1795, %v1611
  %1867 = vst.msk [vmem:[%s2 + $0x238] sm:$0xff] %vm1795, %v1613
  %1868 = vst.msk [vmem:[%s2 + $0x240] sm:$0xff] %vm1795, %v1616
  %1869 = vst.msk [vmem:[%s2 + $0x248] sm:$0xff] %vm1795, %v1618
  %1870 = vst.msk [vmem:[%s2 + $0x250] sm:$0xff] %vm1795, %v1621
  %1871 = vst.msk [vmem:[%s2 + $0x258] sm:$0xff] %vm1795, %v1623
  %1872 = vst.msk [vmem:[%s2 + $0x260] sm:$0xff] %vm1795, %v1626
  %1873 = vst.msk [vmem:[%s2 + $0x268] sm:$0xff] %vm1795, %v1628
  %1874 = vst.msk [vmem:[%s2 + $0x270] sm:$0xff] %vm1795, %v1631
  %1875 = vst.msk [vmem:[%s2 + $0x278] sm:$0xff] %vm1795, %v1633
  %1876 = vst.msk [vmem:[%s2 + $0x280] sm:$0xff] %vm1795, %v1636
  %1877 = vst.msk [vmem:[%s2 + $0x288] sm:$0xff] %vm1795, %v1638
  %1878 = vst.msk [vmem:[%s2 + $0x290] sm:$0xff] %vm1795, %v1641
  %1879 = vst.msk [vmem:[%s2 + $0x298] sm:$0xff] %vm1795, %v1643
  %1880 = vst.msk [vmem:[%s2 + $0x2a0] sm:$0xff] %vm1795, %v1646
  %1881 = vst.msk [vmem:[%s2 + $0x2a8] sm:$0xff] %vm1795, %v1648
  %1882 = vst.msk [vmem:[%s2 + $0x2b0] sm:$0xff] %vm1795, %v1651
  %1883 = vst.msk [vmem:[%s2 + $0x2b8] sm:$0xff] %vm1795, %v1653
  %1884 = vst.msk [vmem:[%s2 + $0x2c0] sm:$0xff] %vm1795, %v1656
  %1885 = vst.msk [vmem:[%s2 + $0x2c8] sm:$0xff] %vm1795, %v1658
  %1886 = vst.msk [vmem:[%s2 + $0x2d0] sm:$0xff] %vm1795, %v1661
  %1887 = vst.msk [vmem:[%s2 + $0x2d8] sm:$0xff] %vm1795, %v1663
  %1888 = vst.msk [vmem:[%s2 + $0x2e0] sm:$0xff] %vm1795, %v1666
  %1889 = vst.msk [vmem:[%s2 + $0x2e8] sm:$0xff] %vm1795, %v1668
  %1890 = vst.msk [vmem:[%s2 + $0x2f0] sm:$0xff] %vm1795, %v1671
  %1891 = vst.msk [vmem:[%s2 + $0x2f8] sm:$0xff] %vm1795, %v1673
  %1892 = vst.msk [vmem:[%s2 + $0x300] sm:$0xff] %vm1795, %v1676
  %1893 = vst.msk [vmem:[%s2 + $0x308] sm:$0xff] %vm1795, %v1678
  %1894 = vst.msk [vmem:[%s2 + $0x310] sm:$0xff] %vm1795, %v1681
  %1895 = vst.msk [vmem:[%s2 + $0x318] sm:$0xff] %vm1795, %v1683
  %1896 = vst.msk [vmem:[%s2 + $0x320] sm:$0xff] %vm1795, %v1686
  %1897 = vst.msk [vmem:[%s2 + $0x328] sm:$0xff] %vm1795, %v1688
  %1898 = vst.msk [vmem:[%s2 + $0x330] sm:$0xff] %vm1795, %v1691
  %1899 = vst.msk [vmem:[%s2 + $0x338] sm:$0xff] %vm1795, %v1693
  %1900 = vst.msk [vmem:[%s2 + $0x340] sm:$0xff] %vm1795, %v1696
  %1901 = vst.msk [vmem:[%s2 + $0x348] sm:$0xff] %vm1795, %v1698
  %1902 = vst.msk [vmem:[%s2 + $0x350] sm:$0xff] %vm1795, %v1701
  %1903 = vst.msk [vmem:[%s2 + $0x358] sm:$0xff] %vm1795, %v1703
  %1904 = vst.msk [vmem:[%s2 + $0x360] sm:$0xff] %vm1795, %v1706
  %1905 = vst.msk [vmem:[%s2 + $0x368] sm:$0xff] %vm1795, %v1708
  %1906 = vst.msk [vmem:[%s2 + $0x370] sm:$0xff] %vm1795, %v1711
  %1907 = vst.msk [vmem:[%s2 + $0x378] sm:$0xff] %vm1795, %v1713
  %1908 = vst.msk [vmem:[%s2 + $0x380] sm:$0xff] %vm1795, %v1716
  %1909 = vst.msk [vmem:[%s2 + $0x388] sm:$0xff] %vm1795, %v1718
  %1910 = vst.msk [vmem:[%s2 + $0x390] sm:$0xff] %vm1795, %v1721
  %1911 = vst.msk [vmem:[%s2 + $0x398] sm:$0xff] %vm1795, %v1723
  %1912 = vst.msk [vmem:[%s2 + $0x3a0] sm:$0xff] %vm1795, %v1726
  %1913 = vst.msk [vmem:[%s2 + $0x3a8] sm:$0xff] %vm1795, %v1728
  %1914 = vst.msk [vmem:[%s2 + $0x3b0] sm:$0xff] %vm1795, %v1731
  %1915 = vst.msk [vmem:[%s2 + $0x3b8] sm:$0xff] %vm1795, %v1733
  %1916 = vst.msk [vmem:[%s2 + $0x3c0] sm:$0xff] %vm1795, %v1736
  %1917 = vst.msk [vmem:[%s2 + $0x3c8] sm:$0xff] %vm1795, %v1738
  %1918 = vst.msk [vmem:[%s2 + $0x3d0] sm:$0xff] %vm1795, %v1741
  %1919 = vst.msk [vmem:[%s2 + $0x3d8] sm:$0xff] %vm1795, %v1743
  %1920 = vst.msk [vmem:[%s2 + $0x3e0] sm:$0xff] %vm1795, %v1746
  %1921 = vst.msk [vmem:[%s2 + $0x3e8] sm:$0xff] %vm1795, %v1748
  %1922 = vst.msk [vmem:[%s2 + $0x3f0] sm:$0xff] %vm1795, %v1751
  %1923 = vst.msk [vmem:[%s2 + $0x3f8] sm:$0xff] %vm1795, %v1753
  %1924 = vst.msk [vmem:[%s2 + $0x400] sm:$0xff] %vm1795, %v1756
  %1925 = vst.msk [vmem:[%s2 + $0x408] sm:$0xff] %vm1795, %v1758
  %1926 = vst.msk [vmem:[%s2 + $0x410] sm:$0xff] %vm1795, %v1761
  %1927 = vst.msk [vmem:[%s2 + $0x418] sm:$0xff] %vm1795, %v1763
  %1928 = vst.msk [vmem:[%s2 + $0x420] sm:$0xff] %vm1795, %v1766
  %1929 = vst.msk [vmem:[%s2 + $0x428] sm:$0xff] %vm1795, %v1768
  %1930 = vst.msk [vmem:[%s2 + $0x430] sm:$0xff] %vm1795, %v1771
  %1931 = vst.msk [vmem:[%s2 + $0x438] sm:$0xff] %vm1795, %v1773
  %1932 = vst.msk [vmem:[%s2 + $0x440] sm:$0xff] %vm1795, %v1776
  %1933 = vst.msk [vmem:[%s2 + $0x448] sm:$0xff] %vm1795, %v1778
  %1934 = vst.msk [vmem:[%s2 + $0x450] sm:$0xff] %vm1795, %v1781
  %1935 = vst.msk [vmem:[%s2 + $0x458] sm:$0xff] %vm1795, %v1783
  %1936 = vst.msk [vmem:[%s2 + $0x460] sm:$0xff] %vm1795, %v1786
  %1937 = vst.msk [vmem:[%s2 + $0x468] sm:$0xff] %vm1795, %v1788
  %1938 = vst.msk [vmem:[%s2 + $0x470] sm:$0xff] %vm1795, %v1791
  %1939 = vst.msk [vmem:[%s2 + $0x478] sm:$0xff] %vm1795, %v1793
  // Predicated region
  $region10: #{conv2d_1x1.1} parent=0 // pred_check
    _
  $region11: #{conv2d_1x1.1} parent=0 // pred_check_branch
    %1941 = sbr.rel (0) target = $region13
  $region12: #{conv2d_1x1.1} parent=0 // pred_region
    _
  $region13: #{conv2d_1x1.1} parent=0 // pred_fallthru
    _
  // Predicated region
  $region14: #{conv2d_1x1.1} parent=0 // pred_check
    _
  $region15: #{conv2d_1x1.1} parent=0 // pred_check_branch
    %1943 = sbr.rel (0) target = $region17
  $region16: #{conv2d_1x1.1} parent=0 // pred_region
    _
  $region17: #{conv2d_1x1.1} parent=0 // pred_fallthru
    _

</llo_original>
